<compile_context>
chip_gen: v7x
topology: tpu7x:2x2x1
jax: 0.10.0
libtpu: 0.0.40
codegen_flags: <defaults>
</compile_context>

<pallas_src>
import jax
import jax.numpy as jnp
from jax.experimental import pallas as pl
from jax.experimental.pallas import tpu as pltpu


def _round_up(x, m):
    return ((x + m - 1) // m) * m


def _vmem_limit_bytes():
    """Per-generation scoped-VMEM limit: ~75% of physical, capped at 100 MiB.

    v5e/v6e (128 MiB physical) -> 96 MiB, v7x (64 MiB physical) -> 48 MiB.
    """
    try:
        phys = int(pltpu.get_tpu_info().vmem_capacity_bytes)
    except Exception:  # no/odd TPU info -> assume the smallest (v7x) VMEM
        phys = 64 << 20
    return min((phys * 3) // 4, 100 << 20)


def _enc_proj_kernel(x_ref, w1_ref, b1_ref, w2_ref, b2_ref, o_ref, acc_ref):
    """Fused encoder (Linear+ReLU) + projection (Linear), tiled over (B, F).

    Grid axes: (i = batch tile [parallel], k = F reduction tile [arbitrary]).

    x_ref : (tB, tF)     bf16 flattened EEG tile
    w1_ref: (tF, H)      bf16 encoder weight slab (streamed along k)
    b1_ref: (1, H)       f32 encoder bias           (grid-invariant)
    w2_ref: (H, P)       bf16 projection weight     (grid-invariant)
    b2_ref: (1, P)       f32 projection bias        (grid-invariant)
    o_ref : (tB, P)      output tile (written only on the last k step)
    acc_ref:(tB, H) f32  hidden-layer accumulator scratch
    """
    k = pl.program_id(1)

    @pl.when(k == 0)
    def _init():
        acc_ref[...] = jnp.zeros_like(acc_ref)

    # encoder matmul: accumulate partial x @ w1 over the F reduction axis.
    acc_ref[...] += jnp.dot(x_ref[...], w1_ref[...],
                            preferred_element_type=jnp.float32)

    @pl.when(k == pl.num_programs(1) - 1)
    def _finalize():
        # encoder epilogue: bias + ReLU (f32 on the VPU)
        h = jnp.maximum(acc_ref[...] + b1_ref[...], 0.0)
        # proj_enc matmul.  The f32 hidden activation is requantized to bf16
        # for the MXU (f32 accumulation) -- deliberate precision trade.
        out = jnp.dot(h.astype(w2_ref.dtype), w2_ref[...],
                      preferred_element_type=jnp.float32)
        o_ref[...] = (out + b2_ref[...]).astype(o_ref.dtype)


def prepare_params(w1, b1, w2, b2, *, tile_f=1024):
    """One-time host-side packing of the weights.

    Hoisted out of the forward path so per-call work is only the x padding
    plus the kernel itself (per-call weight pads would add HBM traffic
    comparable to the kernel's own w1 stream).

    w1: (F, H), w2: (H, P) stored (in_features, out_features); cast to bf16.
    b1: (H,) or (1, H), b2: (P,) or (1, P); kept in f32.
    """
    F, H = w1.shape
    P = w2.shape[1]

    H_pad = _round_up(H, 128)
    P_pad = _round_up(P, 128)

    # Reduction tile: lane dim of x and sublane dim of w1 -> multiple of 128.
    tF = max(128, min(_round_up(tile_f, 128), _round_up(F, 128)))
    # Keep the double-buffered w1 slab within ~40% of the VMEM budget so the
    # batch tile still has room (this bound is what bites on v5e / v7x).
    budget = (_vmem_limit_bytes() * 85) // 100
    while tF > 128 and 2 * tF * H_pad * 2 > (2 * budget) // 5:
        tF = max(128, _round_up(tF // 2, 128))
    F_pad = _round_up(F, tF)

    # Zero-padding keeps the math exact: padded F rows/cols contribute 0 to
    # the first matmul, padded H cols give ReLU(0)=0 into zero w2 rows, and
    # padded B rows / P cols are sliced away in the forward.
    w1_p = jnp.pad(w1.astype(jnp.bfloat16), ((0, F_pad - F), (0, H_pad - H)))
    w2_p = jnp.pad(w2.astype(jnp.bfloat16), ((0, H_pad - H), (0, P_pad - P)))
    b1_p = jnp.pad(jnp.asarray(b1, jnp.float32).reshape(1, H),
                   ((0, 0), (0, H_pad - H)))
    b2_p = jnp.pad(jnp.asarray(b2, jnp.float32).reshape(1, P),
                   ((0, 0), (0, P_pad - P)))
    return dict(w1=w1_p, b1=b1_p, w2=w2_p, b2=b2_p,
                F=F, H=H, P=P, F_pad=F_pad, H_pad=H_pad, P_pad=P_pad,
                tile_f=tF)


def _derive_tile_b(B, params, tile_b):
    """Pick the largest batch tile that fits the per-generation VMEM budget.

    Roofline: w1 is re-streamed once per batch tile, so arithmetic intensity
    of the dominant matmul is ~tB flop/byte; compute-bound thresholds are
    ~240 (v5e), ~640 (v6e), ~310 (v7x) -- hence the tile_b=512 default.
    """
    tF, H_pad, P_pad = params["tile_f"], params["H_pad"], params["P_pad"]
    budget = (_vmem_limit_bytes() * 85) // 100

    w1_slab = 2 * tF * H_pad * 2                      # double-buffered bf16
    inv = 2 * (H_pad * P_pad * 2 + H_pad * 4 + P_pad * 4)  # worst case x2

    def fits(tb):
        per_b = (2 * tb * tF * 2        # x tile, double-buffered bf16
                 + tb * H_pad * 4       # f32 accumulator scratch
                 + 2 * tb * P_pad * 2)  # output tile, double-buffered
        return per_b + w1_slab + inv <= budget

    tB = min(_round_up(max(tile_b, 16), 16), _round_up(B, 16))
    while tB > 16 and not fits(tB):
        tB = max(16, _round_up(tB // 2, 16))

    B_pad = _round_up(B, tB)
    # Keep >= 2 batch tiles for large batches so the "parallel" axis can
    # shard across both v7x TensorCores (each half still >= 256 rows).
    if B_pad // tB == 1 and B >= 512:
        tB = _round_up(B_pad // 2, 16)
        B_pad = _round_up(B, tB)
    return tB, B_pad


def add_proj_enc_forward(x, params, *, tile_b=512):
    """x: (B, C, T) EEG (or (B, F) pre-flattened).  Returns (B, P) embeddings."""
    B = x.shape[0]
    x2d = x.reshape(B, -1)
    F, P = params["F"], params["P"]
    assert x2d.shape[1] == F, (x2d.shape, F)
    F_pad, H_pad, P_pad = params["F_pad"], params["H_pad"], params["P_pad"]
    tF = params["tile_f"]

    tB, B_pad = _derive_tile_b(B, params, tile_b)

    x_p = x2d.astype(jnp.bfloat16)
    if (B_pad, F_pad) != (B, F):
        x_p = jnp.pad(x_p, ((0, B_pad - B), (0, F_pad - F)))

    grid = (B_pad // tB, F_pad // tF)
    n_btiles = grid[0]

    cost = pl.CostEstimate(
        flops=2 * B_pad * F_pad * H_pad + 2 * B_pad * H_pad * P_pad,
        transcendentals=0,
        bytes_accessed=int(
            B_pad * F_pad * 2                 # x streamed once
            + n_btiles * F_pad * H_pad * 2    # w1 re-streamed per batch tile
            + H_pad * P_pad * 2 + H_pad * 4 + P_pad * 4
            + B_pad * P_pad * 2),             # output
    )

    def call(single_buffer_invariants):
        def inv_spec(shape):
            # Grid-invariant operands: constant index_map, so a second
            # pipeline buffer is pure VMEM waste when Buffered(1) is available.
            if single_buffer_invariants:
                return pl.BlockSpec(shape, lambda i, k: (0, 0),
                                    pipeline_mode=pl.Buffered(1))
            return pl.BlockSpec(shape, lambda i, k: (0, 0))

        return pl.pallas_call(
            _enc_proj_kernel,
            out_shape=jax.ShapeDtypeStruct((B_pad, P_pad), x.dtype),
            grid_spec=pltpu.PrefetchScalarGridSpec(
                num_scalar_prefetch=0,
                grid=grid,
                in_specs=[
                    pl.BlockSpec((tB, tF), lambda i, k: (i, k)),      # x tile
                    pl.BlockSpec((tF, H_pad), lambda i, k: (k, 0)),   # w1 slab
                    inv_spec((1, H_pad)),                             # b1
                    inv_spec((H_pad, P_pad)),                         # w2
                    inv_spec((1, P_pad)),                             # b2
                ],
                out_specs=pl.BlockSpec((tB, P_pad), lambda i, k: (i, 0)),
                scratch_shapes=[pltpu.VMEM((tB, H_pad), jnp.float32)],
            ),
            compiler_params=pltpu.CompilerParams(
                dimension_semantics=("parallel", "arbitrary"),
                vmem_limit_bytes=int(_vmem_limit_bytes()),
            ),
            cost_estimate=cost,
        )(x_p, params["w1"], params["b1"], params["w2"], params["b2"])

    try:
        out = call(True)
    except Exception:
        # Fallback for JAX/Mosaic versions where pipeline_mode=pl.Buffered(1)
        # is not accepted by the grid-based pallas_call lowering.
        out = call(False)

    return out[:B, :P]


def _reference(x, w1, b1, w2, b2):
    """Pure-JAX f32 reference on the same (already bf16-quantized) params."""
    B = x.shape[0]
    x2d = x.reshape(B, -1).astype(jnp.float32)
    w1f = w1.astype(jnp.float32)
    w2f = w2.astype(jnp.float32)
    h = jnp.maximum(x2d @ w1f + b1.reshape(1, -1).astype(jnp.float32), 0.0)
    return h @ w2f + b2.reshape(1, -1).astype(jnp.float32)


if __name__ == "__main__":
    # Small but tiling-exercising shapes: batch=48, channels=8, time=50 ->
    # F=400, hidden H=200, projection P=96.  With tile_b=16, tile_f=256 the
    # grid is (3 batch tiles x 2 reduction tiles) and every padding path
    # (F->512, H->256, P->128) is exercised.
    B, C, T = 48, 8, 50
    F = C * T
    H, P = 200, 96

    key = jax.random.PRNGKey(0)
    kx, kw1, kb1, kw2, kb2 = jax.random.split(key, 5)

    # Activations / weights quantized to bf16 ONCE on the host; biases f32.
    x = jax.random.normal(kx, (B, C, T), dtype=jnp.float32).astype(jnp.bfloat16)
    w1 = (jax.random.normal(kw1, (F, H), dtype=jnp.float32)
          * (1.0 / F) ** 0.5).astype(jnp.bfloat16)
    b1 = jax.random.normal(kb1, (1, H), dtype=jnp.float32) * 0.01
    w2 = (jax.random.normal(kw2, (H, P), dtype=jnp.float32)
          * (1.0 / H) ** 0.5).astype(jnp.bfloat16)
    b2 = jax.random.normal(kb2, (1, P), dtype=jnp.float32) * 0.01

    # One-time weight packing (hoisted out of the per-call path).
    params = prepare_params(w1, b1, w2, b2, tile_f=256)

    out = add_proj_enc_forward(x, params, tile_b=16)
    out = jax.block_until_ready(out)

    ref = _reference(x, w1, b1, w2, b2)
    assert out.shape == (B, P), out.shape
    assert jnp.allclose(out.astype(jnp.float32), ref, atol=5e-2, rtol=5e-2), (
        "mismatch vs reference")

    # Also exercise the large-tile default path (single tile covers the data).
    out2 = jax.block_until_ready(
        add_proj_enc_forward(x, prepare_params(w1, b1, w2, b2)))
    assert jnp.allclose(out2.astype(jnp.float32), ref, atol=5e-2, rtol=5e-2), (
        "mismatch vs reference (default tiles)")

    print("KERNEL_OK")
</pallas_src>

<mosaic_0001>
module attributes {stable_mosaic.version = 11 : i64} {
  func.func @_enc_proj_kernel(%arg0: i32, %arg1: i32, %arg2: memref<16x256xbf16, #tpu.memory_space<vmem>>, %arg3: memref<256x256xbf16, #tpu.memory_space<vmem>>, %arg4: memref<1x256xf32, #tpu.memory_space<vmem>>, %arg5: memref<256x128xbf16, #tpu.memory_space<vmem>>, %arg6: memref<1x128xf32, #tpu.memory_space<vmem>>, %arg7: memref<16x128xbf16, #tpu.memory_space<vmem>>, %arg8: memref<16x256xf32, #tpu.memory_space<vmem>>) attributes {dimension_semantics = [#tpu.dimension_semantics<parallel>, #tpu.dimension_semantics<arbitrary>], iteration_bounds = array<i64: 3, 2>, scalar_prefetch = 0 : i64, scratch_operands = 1 : i64, tpu.core_type = #tpu.core_type<tc>, window_params = [{transform_indices = @transform_0, window_bounds = array<i64: 16, 256>}, {transform_indices = @transform_1, window_bounds = array<i64: 256, 256>}, {pipeline_mode = #tpu.pipeline_mode<synchronous>, transform_indices = @transform_2, window_bounds = array<i64: 1, 256>}, {pipeline_mode = #tpu.pipeline_mode<synchronous>, transform_indices = @transform_3, window_bounds = array<i64: 256, 128>}, {pipeline_mode = #tpu.pipeline_mode<synchronous>, transform_indices = @transform_4, window_bounds = array<i64: 1, 128>}, {transform_indices = @transform_5, window_bounds = array<i64: 16, 128>}]} {
    %c0_i32 = arith.constant 0 : i32
    %0 = arith.cmpi eq, %arg1, %c0_i32 : i32
    %1 = arith.extui %0 : i1 to i32
    %c0_i32_0 = arith.constant 0 : i32
    %2 = arith.cmpi ne, %1, %c0_i32_0 : i32
    scf.if %2 {
      %cst_9 = arith.constant 0.000000e+00 : f32
      %12 = vector.broadcast %cst_9 : f32 to vector<16x256xf32>
      %c0_10 = arith.constant 0 : index
      %c0_11 = arith.constant 0 : index
      %13 = vector.load %arg8[%c0_10, %c0_11] : memref<16x256xf32, #tpu.memory_space<vmem>>, vector<16x256xf32>
      tpu.vector_store %arg8[%c0_10, %c0_11], %12 {strides = array<i32>} : memref<16x256xf32, #tpu.memory_space<vmem>>, vector<16x256xf32>,
    } else {
    }
    %c0 = arith.constant 0 : index
    %c0_1 = arith.constant 0 : index
    %3 = vector.load %arg8[%c0, %c0_1] : memref<16x256xf32, #tpu.memory_space<vmem>>, vector<16x256xf32>
    %c0_2 = arith.constant 0 : index
    %c0_3 = arith.constant 0 : index
    %4 = vector.load %arg2[%c0_2, %c0_3] : memref<16x256xbf16, #tpu.memory_space<vmem>>, vector<16x256xbf16>
    %c0_4 = arith.constant 0 : index
    %c0_5 = arith.constant 0 : index
    %5 = vector.load %arg3[%c0_4, %c0_5] : memref<256x256xbf16, #tpu.memory_space<vmem>>, vector<256x256xbf16>
    %cst = arith.constant dense<0.000000e+00> : vector<16x256xf32>
    %6 = tpu.matmul %4, %5, %cst {dimension_numbers = #tpu.dot_dimension_numbers<[1], [0], [0], [1], [0, 0, 1, 1], [], []>} : vector<16x256xbf16>, vector<256x256xbf16>, vector<16x256xf32> -> vector<16x256xf32>
    %7 = arith.addf %3, %6 : vector<16x256xf32>
    %c0_6 = arith.constant 0 : index
    %c0_7 = arith.constant 0 : index
    %8 = vector.load %arg8[%c0_6, %c0_7] : memref<16x256xf32, #tpu.memory_space<vmem>>, vector<16x256xf32>
    tpu.vector_store %arg8[%c0_6, %c0_7], %7 {strides = array<i32>} : memref<16x256xf32, #tpu.memory_space<vmem>>, vector<16x256xf32>,
    %c1_i32 = arith.constant 1 : i32
    %9 = arith.cmpi eq, %arg1, %c1_i32 : i32
    %10 = arith.extui %9 : i1 to i32
    %c0_i32_8 = arith.constant 0 : i32
    %11 = arith.cmpi ne, %10, %c0_i32_8 : i32
    scf.if %11 {
      %c0_9 = arith.constant 0 : index
      %c0_10 = arith.constant 0 : index
      %12 = vector.load %arg8[%c0_9, %c0_10] : memref<16x256xf32, #tpu.memory_space<vmem>>, vector<16x256xf32>
      %c0_11 = arith.constant 0 : index
      %c0_12 = arith.constant 0 : index
      %13 = vector.load %arg4[%c0_11, %c0_12] : memref<1x256xf32, #tpu.memory_space<vmem>>, vector<1x256xf32>
      %14 = vector.broadcast %13 : vector<1x256xf32> to vector<16x256xf32>
      %15 = arith.addf %12, %14 : vector<16x256xf32>
      %cst_13 = arith.constant 0.000000e+00 : f32
      %16 = vector.broadcast %cst_13 : f32 to vector<16x256xf32>
      %17 = arith.maximumf %15, %16 : vector<16x256xf32>
      %18 = arith.truncf %17 : vector<16x256xf32> to vector<16x256xbf16>
      %c0_14 = arith.constant 0 : index
      %c0_15 = arith.constant 0 : index
      %19 = vector.load %arg5[%c0_14, %c0_15] : memref<256x128xbf16, #tpu.memory_space<vmem>>, vector<256x128xbf16>
      %cst_16 = arith.constant dense<0.000000e+00> : vector<16x128xf32>
      %20 = tpu.matmul %18, %19, %cst_16 {dimension_numbers = #tpu.dot_dimension_numbers<[1], [0], [0], [1], [0, 0, 1, 1], [], []>} : vector<16x256xbf16>, vector<256x128xbf16>, vector<16x128xf32> -> vector<16x128xf32>
      %c0_17 = arith.constant 0 : index
      %c0_18 = arith.constant 0 : index
      %21 = vector.load %arg6[%c0_17, %c0_18] : memref<1x128xf32, #tpu.memory_space<vmem>>, vector<1x128xf32>
      %22 = vector.broadcast %21 : vector<1x128xf32> to vector<16x128xf32>
      %23 = arith.addf %20, %22 : vector<16x128xf32>
      %24 = arith.truncf %23 : vector<16x128xf32> to vector<16x128xbf16>
      %c0_19 = arith.constant 0 : index
      %c0_20 = arith.constant 0 : index
      %25 = vector.load %arg7[%c0_19, %c0_20] : memref<16x128xbf16, #tpu.memory_space<vmem>>, vector<16x128xbf16>
      tpu.vector_store %arg7[%c0_19, %c0_20], %24 {strides = array<i32>} : memref<16x128xbf16, #tpu.memory_space<vmem>>, vector<16x128xbf16>,
    } else {
    }
    return
  }
  func.func @transform_0(%arg0: i32, %arg1: i32) -> (i32, i32) {
    %c0_i32 = arith.constant 0 : i32
    return %arg0, %arg1 : i32, i32
  }
  func.func @transform_1(%arg0: i32, %arg1: i32) -> (i32, i32) {
    %c0_i32 = arith.constant 0 : i32
    %c0_i32_0 = arith.constant 0 : i32
    return %arg1, %c0_i32 : i32, i32
  }
  func.func @transform_2(%arg0: i32, %arg1: i32) -> (i32, i32) {
    %c0_i32 = arith.constant 0 : i32
    %c0_i32_0 = arith.constant 0 : i32
    %c0_i32_1 = arith.constant 0 : i32
    return %c0_i32, %c0_i32_0 : i32, i32
  }
  func.func @transform_3(%arg0: i32, %arg1: i32) -> (i32, i32) {
    %c0_i32 = arith.constant 0 : i32
    %c0_i32_0 = arith.constant 0 : i32
    %c0_i32_1 = arith.constant 0 : i32
    return %c0_i32, %c0_i32_0 : i32, i32
  }
  func.func @transform_4(%arg0: i32, %arg1: i32) -> (i32, i32) {
    %c0_i32 = arith.constant 0 : i32
    %c0_i32_0 = arith.constant 0 : i32
    %c0_i32_1 = arith.constant 0 : i32
    return %c0_i32, %c0_i32_0 : i32, i32
  }
  func.func @transform_5(%arg0: i32, %arg1: i32) -> (i32, i32) {
    %c0_i32 = arith.constant 0 : i32
    %c0_i32_0 = arith.constant 0 : i32
    return %arg0, %c0_i32 : i32, i32
  }
}

module attributes {stable_mosaic.version = 11 : i64} {
  func.func @_enc_proj_kernel(%arg0: i32, %arg1: i32, %arg2: memref<16x256xbf16, #tpu.memory_space<vmem>>, %arg3: memref<256x256xbf16, #tpu.memory_space<vmem>>, %arg4: memref<1x256xf32, #tpu.memory_space<vmem>>, %arg5: memref<256x128xbf16, #tpu.memory_space<vmem>>, %arg6: memref<1x128xf32, #tpu.memory_space<vmem>>, %arg7: memref<16x128xbf16, #tpu.memory_space<vmem>>, %arg8: memref<16x256xf32, #tpu.memory_space<vmem>>) attributes {dimension_semantics = [#tpu.dimension_semantics<parallel>, #tpu.dimension_semantics<arbitrary>], iteration_bounds = array<i64: 3, 2>, scalar_prefetch = 0 : i64, scratch_operands = 1 : i64, tpu.core_type = #tpu.core_type<tc>, window_params = [{transform_indices = @transform_0, window_bounds = array<i64: 16, 256>}, {transform_indices = @transform_1, window_bounds = array<i64: 256, 256>}, {pipeline_mode = #tpu.pipeline_mode<synchronous>, transform_indices = @transform_2, window_bounds = array<i64: 1, 256>}, {pipeline_mode = #tpu.pipeline_mode<synchronous>, transform_indices = @transform_3, window_bounds = array<i64: 256, 128>}, {pipeline_mode = #tpu.pipeline_mode<synchronous>, transform_indices = @transform_4, window_bounds = array<i64: 1, 128>}, {transform_indices = @transform_5, window_bounds = array<i64: 16, 128>}]} {
    %c0_i32 = arith.constant 0 : i32
    %0 = arith.cmpi eq, %arg1, %c0_i32 : i32
    %1 = arith.extui %0 : i1 to i32
    %c0_i32_0 = arith.constant 0 : i32
    %2 = arith.cmpi ne, %1, %c0_i32_0 : i32
    scf.if %2 {
      %cst_9 = arith.constant 0.000000e+00 : f32
      %12 = vector.broadcast %cst_9 : f32 to vector<16x256xf32>
      %c0_10 = arith.constant 0 : index
      %c0_11 = arith.constant 0 : index
      %13 = vector.load %arg8[%c0_10, %c0_11] : memref<16x256xf32, #tpu.memory_space<vmem>>, vector<16x256xf32>
      tpu.vector_store %arg8[%c0_10, %c0_11], %12 {strides = array<i32>} : memref<16x256xf32, #tpu.memory_space<vmem>>, vector<16x256xf32>,
    } else {
    }
    %c0 = arith.constant 0 : index
    %c0_1 = arith.constant 0 : index
    %3 = vector.load %arg8[%c0, %c0_1] : memref<16x256xf32, #tpu.memory_space<vmem>>, vector<16x256xf32>
    %c0_2 = arith.constant 0 : index
    %c0_3 = arith.constant 0 : index
    %4 = vector.load %arg2[%c0_2, %c0_3] : memref<16x256xbf16, #tpu.memory_space<vmem>>, vector<16x256xbf16>
    %c0_4 = arith.constant 0 : index
    %c0_5 = arith.constant 0 : index
    %5 = vector.load %arg3[%c0_4, %c0_5] : memref<256x256xbf16, #tpu.memory_space<vmem>>, vector<256x256xbf16>
    %cst = arith.constant dense<0.000000e+00> : vector<16x256xf32>
    %6 = tpu.matmul %4, %5, %cst {dimension_numbers = #tpu.dot_dimension_numbers<[1], [0], [0], [1], [0, 0, 1, 1], [], []>} : vector<16x256xbf16>, vector<256x256xbf16>, vector<16x256xf32> -> vector<16x256xf32>
    %7 = arith.addf %3, %6 : vector<16x256xf32>
    %c0_6 = arith.constant 0 : index
    %c0_7 = arith.constant 0 : index
    %8 = vector.load %arg8[%c0_6, %c0_7] : memref<16x256xf32, #tpu.memory_space<vmem>>, vector<16x256xf32>
    tpu.vector_store %arg8[%c0_6, %c0_7], %7 {strides = array<i32>} : memref<16x256xf32, #tpu.memory_space<vmem>>, vector<16x256xf32>,
    %c1_i32 = arith.constant 1 : i32
    %9 = arith.cmpi eq, %arg1, %c1_i32 : i32
    %10 = arith.extui %9 : i1 to i32
    %c0_i32_8 = arith.constant 0 : i32
    %11 = arith.cmpi ne, %10, %c0_i32_8 : i32
    scf.if %11 {
      %c0_9 = arith.constant 0 : index
      %c0_10 = arith.constant 0 : index
      %12 = vector.load %arg8[%c0_9, %c0_10] : memref<16x256xf32, #tpu.memory_space<vmem>>, vector<16x256xf32>
      %c0_11 = arith.constant 0 : index
      %c0_12 = arith.constant 0 : index
      %13 = vector.load %arg4[%c0_11, %c0_12] : memref<1x256xf32, #tpu.memory_space<vmem>>, vector<1x256xf32>
      %14 = vector.broadcast %13 : vector<1x256xf32> to vector<16x256xf32>
      %15 = arith.addf %12, %14 : vector<16x256xf32>
      %cst_13 = arith.constant 0.000000e+00 : f32
      %16 = vector.broadcast %cst_13 : f32 to vector<16x256xf32>
      %17 = arith.maximumf %15, %16 : vector<16x256xf32>
      %18 = arith.truncf %17 : vector<16x256xf32> to vector<16x256xbf16>
      %c0_14 = arith.constant 0 : index
      %c0_15 = arith.constant 0 : index
      %19 = vector.load %arg5[%c0_14, %c0_15] : memref<256x128xbf16, #tpu.memory_space<vmem>>, vector<256x128xbf16>
      %cst_16 = arith.constant dense<0.000000e+00> : vector<16x128xf32>
      %20 = tpu.matmul %18, %19, %cst_16 {dimension_numbers = #tpu.dot_dimension_numbers<[1], [0], [0], [1], [0, 0, 1, 1], [], []>} : vector<16x256xbf16>, vector<256x128xbf16>, vector<16x128xf32> -> vector<16x128xf32>
      %c0_17 = arith.constant 0 : index
      %c0_18 = arith.constant 0 : index
      %21 = vector.load %arg6[%c0_17, %c0_18] : memref<1x128xf32, #tpu.memory_space<vmem>>, vector<1x128xf32>
      %22 = vector.broadcast %21 : vector<1x128xf32> to vector<16x128xf32>
      %23 = arith.addf %20, %22 : vector<16x128xf32>
      %24 = arith.truncf %23 : vector<16x128xf32> to vector<16x128xbf16>
      %c0_19 = arith.constant 0 : index
      %c0_20 = arith.constant 0 : index
      %25 = vector.load %arg7[%c0_19, %c0_20] : memref<16x128xbf16, #tpu.memory_space<vmem>>, vector<16x128xbf16>
      tpu.vector_store %arg7[%c0_19, %c0_20], %24 {strides = array<i32>} : memref<16x128xbf16, #tpu.memory_space<vmem>>, vector<16x128xbf16>,
    } else {
    }
    return
  }
  func.func @transform_0(%arg0: i32, %arg1: i32) -> (i32, i32) {
    %c0_i32 = arith.constant 0 : i32
    return %arg0, %arg1 : i32, i32
  }
  func.func @transform_1(%arg0: i32, %arg1: i32) -> (i32, i32) {
    %c0_i32 = arith.constant 0 : i32
    %c0_i32_0 = arith.constant 0 : i32
    return %arg1, %c0_i32 : i32, i32
  }
  func.func @transform_2(%arg0: i32, %arg1: i32) -> (i32, i32) {
    %c0_i32 = arith.constant 0 : i32
    %c0_i32_0 = arith.constant 0 : i32
    %c0_i32_1 = arith.constant 0 : i32
    return %c0_i32, %c0_i32_0 : i32, i32
  }
  func.func @transform_3(%arg0: i32, %arg1: i32) -> (i32, i32) {
    %c0_i32 = arith.constant 0 : i32
    %c0_i32_0 = arith.constant 0 : i32
    %c0_i32_1 = arith.constant 0 : i32
    return %c0_i32, %c0_i32_0 : i32, i32
  }
  func.func @transform_4(%arg0: i32, %arg1: i32) -> (i32, i32) {
    %c0_i32 = arith.constant 0 : i32
    %c0_i32_0 = arith.constant 0 : i32
    %c0_i32_1 = arith.constant 0 : i32
    return %c0_i32, %c0_i32_0 : i32, i32
  }
  func.func @transform_5(%arg0: i32, %arg1: i32) -> (i32, i32) {
    %c0_i32 = arith.constant 0 : i32
    %c0_i32_0 = arith.constant 0 : i32
    return %arg0, %c0_i32 : i32, i32
  }
}

</mosaic_0001>

<llo_original>
// kernel: tpu_custom_call.1
$region0: #{tpu_custom_call.1}
  #allocation0 [shape = 'u32[]', space=smem, size = 0x4, offset = 0x4, fixed_abs, tag = 'smem constant byte address 0x4 - core index']
  #allocation1 [shape = 'u32[144,128]{1,0:T(1,128)}', space=vmem, size = 0x12000, scoped, tag = 'internal scratch']
  #allocation2 [shape = 'f32[16,256]{1,0:T(8,128)}', space=vmem, size = 0x4000, scoped, tag = 'scratch operand']
  %s0 = inlined_call_operand.hbm [shape: bf16[48,512], index: 0, kind: input, shape index: {}]
  %s1 = inlined_call_operand.hbm [shape: bf16[512,256], index: 1, kind: input, shape index: {}]
  %s2 = inlined_call_operand.vmem [shape: f32[1,256], index: 2, kind: input, shape index: {}]
  %s3 = inlined_call_operand.hbm [shape: bf16[256,128], index: 3, kind: input, shape index: {}]
  %s4 = inlined_call_operand.vmem [shape: f32[1,128], index: 4, kind: input, shape index: {}]
  %s5 = inlined_call_operand.hbm [shape: bf16[48,128], index: 5, kind: output, shape index: {}]
  %s6 = sld [smem:[#allocation0]]
  $region73: #{tpu_custom_call.1} parent=0
    _
  %s8 = ssub.s32 1, %s6
  %s9 = scalar_select 0, %s8, %s6
  $region1: #{tpu_custom_call.1} parent=0
    #allocation3 [shape = 'u8[16384]{0}', space=vmem, size = 0x4000, scoped, tag = 'input window, operand 0']
    #allocation4 [shape = 's32[2]{0}', space=sflag, size = 0x8, scoped, tag = 'scoped memory for tpu_custom_call.1']
    #allocation5 [shape = 's32[2]{0}', space=sflag, size = 0x8, scoped, tag = 'scoped memory for tpu_custom_call.1']
    #allocation6 [shape = 'u8[262144]{0}', space=vmem, size = 0x40000, scoped, tag = 'input window, operand 1']
    #allocation7 [shape = 's32[2]{0}', space=sflag, size = 0x8, scoped, tag = 'scoped memory for tpu_custom_call.1']
    #allocation8 [shape = 'u8[65536]{0}', space=vmem, size = 0x10000, scoped, tag = 'input window, operand 3, single buffered']
    #allocation9 [shape = 'u8[8192]{0}', space=vmem, size = 0x2000, scoped, tag = 'output window, operand 0']
    %10 = vsyncpa [#allocation4], 0
    %s11 = scalar_lea.sflag [#allocation4], 1
    %12 = vsyncpa %s11, 0
    %13 = vsyncpa [#allocation7], 0
    %s14 = scalar_lea.sflag [#allocation7], 1
    %15 = vsyncpa %s14, 0
    %16 = vsyncpa [#allocation5], 0
    %s17 = scalar_lea.sflag [#allocation5], 1
    %18 = vsyncpa %s17, 0
    loop: start=0, step=1, limit=8
    $region2: #{tpu_custom_call.1} parent=1 // loop_pre_header
      _
    $region3: #{tpu_custom_call.1} parent=1 // loop_header
      %s20 = sphi 0, %s24
      %p21 = scmp.ge.s32.totalorder %s20, 8
      %s27 = sphi 0, %s39
      %s28 = sphi 0, %s35
      %s29 = sphi 0, %s27
      %s30 = sphi 0, %s28
      %s31 = sphi 0, %s29
      %s32 = sphi 0, %s30
      %s44 = sphi 0, %s46
      %s47 = sphi 0, %s44
      %s48 = sphi 0, %s47
      %s64 = sphi 0, %s48
      %s70 = sphi 0, %s72
      %s73 = sphi 0, %s70
      %s74 = sphi 0, %s73
      %s90 = sphi 0, %s74
      %s94 = sphi 0, %s94
      %s96 = sphi 0, %s94
      %s97 = sphi 0, %s96
      %s111 = sphi 0, %s97
      %s115 = sphi 0, %s115
      %s117 = sphi 0, %s115
      %s118 = sphi 0, %s117
      %s132 = sphi 0, %s118
      %s136 = sphi 0, %s136
      %s138 = sphi 0, %s136
      %s139 = sphi 0, %s138
      %s153 = sphi 0, %s139
      %s159 = sphi 0, %s161
      %s162 = sphi 0, %s159
      %s163 = sphi 0, %s162
      %s179 = sphi 0, %s163
    $region4: #{tpu_custom_call.1} parent=1 // loop_header_branch
      %23 = sbr.rel (%p21) target = $region8
    $region5: #{tpu_custom_call.1} parent=1 // loop_body
      %s25 = ssub.s32 %s20, 1
      %s26 = ssub.s32 %s20, 2
      %s33 = sadd.s32 1, %s28
      %p34 = scmp.ge.s32.totalorder %s33, 2
      %s35 = scalar_select %p34, 0, %s33
      %s36 = sadd.s32 1, %s27
      %s37 = scalar_select %p34, %s36, %s27
      %p38 = scmp.ge.s32.totalorder %s37, 3
      %s39 = scalar_select %p38, 0, %s37
      %s40 = ssub.s32 %s27, %s39
      %s41 = ssub.s32 %s28, %s35
      %s42 = sor.u32 %s40, %s41
      %p43 = scmp.eq.s32.totalorder %s42, 0
      %s45 = sadd.s32 %s44, 1
      %s46 = scalar_select %p43, %s44, %s45
      %p49 = pneg %p43
      %p50 = scmp.eq.s32.totalorder %s20, 5
      %p51 = por %p49, %p50
      %p52 = scmp.ne.s32.totalorder %s44, %s47
      %p53 = scmp.eq.s32.totalorder %s20, 0
      %p54 = por %p52, %p53
      %p55 = scmp.ne.s32.totalorder %s44, %s47
      %p56 = scmp.eq.s32.totalorder %s25, 5
      %p57 = por %p55, %p56
      %p58 = scmp.ne.s32.totalorder %s47, %s48
      %p59 = scmp.eq.s32.totalorder %s25, 0
      %p60 = por %p58, %p59
      %p61 = scmp.ne.s32.totalorder %s47, %s48
      %p62 = scmp.eq.s32.totalorder %s26, 5
      %p63 = por %p61, %p62
      %p65 = scmp.ne.s32.totalorder %s48, %s64
      %p66 = scmp.eq.s32.totalorder %s26, 0
      %p67 = por %p65, %p66
      %s68 = ssub.s32 %s28, %s35
      %p69 = scmp.eq.s32.totalorder %s68, 0
      %s71 = sadd.s32 %s70, 1
      %s72 = scalar_select %p69, %s70, %s71
      %p75 = pneg %p69
      %p76 = scmp.eq.s32.totalorder %s20, 5
      %p77 = por %p75, %p76
      %p78 = scmp.ne.s32.totalorder %s70, %s73
      %p79 = scmp.eq.s32.totalorder %s20, 0
      %p80 = por %p78, %p79
      %p81 = scmp.ne.s32.totalorder %s70, %s73
      %p82 = scmp.eq.s32.totalorder %s25, 5
      %p83 = por %p81, %p82
      %p84 = scmp.ne.s32.totalorder %s73, %s74
      %p85 = scmp.eq.s32.totalorder %s25, 0
      %p86 = por %p84, %p85
      %p87 = scmp.ne.s32.totalorder %s73, %s74
      %p88 = scmp.eq.s32.totalorder %s26, 5
      %p89 = por %p87, %p88
      %p91 = scmp.ne.s32.totalorder %s74, %s90
      %p92 = scmp.eq.s32.totalorder %s26, 0
      %p93 = por %p91, %p92
      %s95 = sadd.s32 %s94, 1
      %p98 = scmp.eq.s32.totalorder %s20, 5
      %p99 = scmp.ne.s32.totalorder %s94, %s96
      %p100 = scmp.eq.s32.totalorder %s20, 0
      %p101 = por %p99, %p100
      %p102 = scmp.ne.s32.totalorder %s94, %s96
      %p103 = scmp.eq.s32.totalorder %s25, 5
      %p104 = por %p102, %p103
      %p105 = scmp.ne.s32.totalorder %s96, %s97
      %p106 = scmp.eq.s32.totalorder %s25, 0
      %p107 = por %p105, %p106
      %p108 = scmp.ne.s32.totalorder %s96, %s97
      %p109 = scmp.eq.s32.totalorder %s26, 5
      %p110 = por %p108, %p109
      %p112 = scmp.ne.s32.totalorder %s97, %s111
      %p113 = scmp.eq.s32.totalorder %s26, 0
      %p114 = por %p112, %p113
      %s116 = sadd.s32 %s115, 1
      %p119 = scmp.eq.s32.totalorder %s20, 5
      %p120 = scmp.ne.s32.totalorder %s115, %s117
      %p121 = scmp.eq.s32.totalorder %s20, 0
      %p122 = por %p120, %p121
      %p123 = scmp.ne.s32.totalorder %s115, %s117
      %p124 = scmp.eq.s32.totalorder %s25, 5
      %p125 = por %p123, %p124
      %p126 = scmp.ne.s32.totalorder %s117, %s118
      %p127 = scmp.eq.s32.totalorder %s25, 0
      %p128 = por %p126, %p127
      %p129 = scmp.ne.s32.totalorder %s117, %s118
      %p130 = scmp.eq.s32.totalorder %s26, 5
      %p131 = por %p129, %p130
      %p133 = scmp.ne.s32.totalorder %s118, %s132
      %p134 = scmp.eq.s32.totalorder %s26, 0
      %p135 = por %p133, %p134
      %s137 = sadd.s32 %s136, 1
      %p140 = scmp.eq.s32.totalorder %s20, 5
      %p141 = scmp.ne.s32.totalorder %s136, %s138
      %p142 = scmp.eq.s32.totalorder %s20, 0
      %p143 = por %p141, %p142
      %p144 = scmp.ne.s32.totalorder %s136, %s138
      %p145 = scmp.eq.s32.totalorder %s25, 5
      %p146 = por %p144, %p145
      %p147 = scmp.ne.s32.totalorder %s138, %s139
      %p148 = scmp.eq.s32.totalorder %s25, 0
      %p149 = por %p147, %p148
      %p150 = scmp.ne.s32.totalorder %s138, %s139
      %p151 = scmp.eq.s32.totalorder %s26, 5
      %p152 = por %p150, %p151
      %p154 = scmp.ne.s32.totalorder %s139, %s153
      %p155 = scmp.eq.s32.totalorder %s26, 0
      %p156 = por %p154, %p155
      %s157 = ssub.s32 %s27, %s39
      %p158 = scmp.eq.s32.totalorder %s157, 0
      %s160 = sadd.s32 %s159, 1
      %s161 = scalar_select %p158, %s159, %s160
      %p164 = pneg %p158
      %p165 = scmp.eq.s32.totalorder %s20, 5
      %p166 = por %p164, %p165
      %p167 = scmp.ne.s32.totalorder %s159, %s162
      %p168 = scmp.eq.s32.totalorder %s20, 0
      %p169 = por %p167, %p168
      %p170 = scmp.ne.s32.totalorder %s159, %s162
      %p171 = scmp.eq.s32.totalorder %s25, 5
      %p172 = por %p170, %p171
      %p173 = scmp.ne.s32.totalorder %s162, %s163
      %p174 = scmp.eq.s32.totalorder %s25, 0
      %p175 = por %p173, %p174
      %p176 = scmp.ne.s32.totalorder %s162, %s163
      %p177 = scmp.eq.s32.totalorder %s26, 5
      %p178 = por %p176, %p177
      %p180 = scmp.ne.s32.totalorder %s163, %s179
      %p181 = scmp.eq.s32.totalorder %s26, 0
      %p182 = por %p180, %p181
      %p183 = scmp.le.s32.totalorder 1, %s20
      %p184 = scmp.lt.s32.totalorder %s20, 7
      %p185 = pnand %p183, %p184
      %p186 = pneg %p185
      // Predicated region
      $region9: #{tpu_custom_call.1} parent=5 // pred_check
        _
      $region10: #{tpu_custom_call.1} parent=5 // pred_check_branch
        %188 = sbr.rel (%p185) target = $region12
      $region11: #{tpu_custom_call.1} parent=5 // pred_region
        %s189 = ssub.s32 %s20, 1
        // Predicated region
        $region13: #{tpu_custom_call.1} parent=11 // pred_check
          %p190 = pneg %p107
        $region14: #{tpu_custom_call.1} parent=11 // pred_check_branch
          %192 = sbr.rel (%p190) target = $region16
        $region15: #{tpu_custom_call.1} parent=11 // pred_region
          _
        $region16: #{tpu_custom_call.1} parent=11 // pred_fallthru
          _
        // Predicated region
        $region17: #{tpu_custom_call.1} parent=11 // pred_check
          %p193 = pneg %p128
        $region18: #{tpu_custom_call.1} parent=11 // pred_check_branch
          %195 = sbr.rel (%p193) target = $region20
        $region19: #{tpu_custom_call.1} parent=11 // pred_region
          %s197 = ssub.s32 2048, 2048
          %198 = vsyncadd [#allocation7], %s197
          %s199 = sshll.u32 [#allocation8], 4
          %s200 = int_to_ptr.vmem [resolvable:$true] %s199
          %205 = dma.hbm_to_vmem [thread:$0]  %s3, 2048, %s200, [#allocation7], 64, 64, 4
        $region20: #{tpu_custom_call.1} parent=11 // pred_fallthru
          _
        // Predicated region
        $region21: #{tpu_custom_call.1} parent=11 // pred_check
          %p206 = pneg %p149
        $region22: #{tpu_custom_call.1} parent=11 // pred_check_branch
          %208 = sbr.rel (%p206) target = $region24
        $region23: #{tpu_custom_call.1} parent=11 // pred_region
          _
        $region24: #{tpu_custom_call.1} parent=11 // pred_fallthru
          _
      $region12: #{tpu_custom_call.1} parent=5 // pred_fallthru
        _
      %p209 = scmp.lt.s32.totalorder %s20, 6
      // Predicated region
      $region25: #{tpu_custom_call.1} parent=5 // pred_check
        %p210 = pneg %p209
      $region26: #{tpu_custom_call.1} parent=5 // pred_check_branch
        %212 = sbr.rel (%p210) target = $region28
      $region27: #{tpu_custom_call.1} parent=5 // pred_region
        // Predicated region
        $region29: #{tpu_custom_call.1} parent=27 // pred_check
          %p213 = pneg %p54
        $region30: #{tpu_custom_call.1} parent=27 // pred_check_branch
          %215 = sbr.rel (%p213) target = $region32
        $region31: #{tpu_custom_call.1} parent=27 // pred_region
          %s216 = sand.u32 %s44, 1
          %s217 = scalar_lea.sflag [#allocation4], %s216
          %s218 = sand.u32 %s44, 1
          %s219 = smul.addr %s218, 16
          %s220 = scalar_lea.vmem [#allocation3], %s219
          %s221 = smul.u32 2, %s27
          %s222 = smul.u32 2, %s28
          %s224 = ssub.s32 256, 256
          %225 = vsyncadd %s217, %s224
          %s226 = smul.addr %s221, 4
          %s227 = sadd.s32 %s222, %s226
          %s228 = smul.addr %s227, 64
          %s229 = scalar_lea.hbm %s0, %s228
          %s230 = sshll.u32 %s220, 4
          %s231 = int_to_ptr.vmem [resolvable:$true] %s230
          %236 = dma.hbm_to_vmem [thread:$0]  %s229, 256, %s231, %s217, 256, 128, 8
        $region32: #{tpu_custom_call.1} parent=27 // pred_fallthru
          _
        // Predicated region
        $region33: #{tpu_custom_call.1} parent=27 // pred_check
          %p237 = pneg %p80
        $region34: #{tpu_custom_call.1} parent=27 // pred_check_branch
          %239 = sbr.rel (%p237) target = $region36
        $region35: #{tpu_custom_call.1} parent=27 // pred_region
          %s240 = sand.u32 %s20, 1
          %s241 = scalar_lea.sflag [#allocation7], %s240
          %s242 = sand.u32 %s70, 1
          %s243 = smul.addr %s242, 256
          %s244 = scalar_lea.vmem [#allocation6], %s243
          %s245 = smul.u32 32, %s28
          %s247 = ssub.s32 4096, 4096
          %248 = vsyncadd %s241, %s247
          %s249 = smul.addr %s245, 2
          %s250 = smul.addr %s249, 64
          %s251 = scalar_lea.hbm %s1, %s250
          %s252 = sshll.u32 %s244, 4
          %s253 = int_to_ptr.vmem [resolvable:$true] %s252
          %258 = dma.hbm_to_vmem [thread:$0]  %s251, 4096, %s253, %s241, 128, 128, 8
        $region36: #{tpu_custom_call.1} parent=27 // pred_fallthru
          _
      $region28: #{tpu_custom_call.1} parent=5 // pred_fallthru
        _
      %p259 = scmp.le.s32.totalorder 1, %s20
      %p260 = scmp.lt.s32.totalorder %s20, 7
      %p261 = pnand %p259, %p260
      %p262 = pneg %p261
      // Predicated region
      $region37: #{tpu_custom_call.1} parent=5 // pred_check
        _
      $region38: #{tpu_custom_call.1} parent=5 // pred_check_branch
        %264 = sbr.rel (%p261) target = $region40
      $region39: #{tpu_custom_call.1} parent=5 // pred_region
        %s265 = ssub.s32 %s20, 1
        %s266 = sand.u32 %s47, 1
        %s267 = scalar_lea.sflag [#allocation4], %s266
        %s268 = sand.u32 %s47, 1
        %s269 = smul.addr %s268, 16
        %s270 = scalar_lea.vmem [#allocation3], %s269
        // Predicated region
        $region41: #{tpu_custom_call.1} parent=39 // pred_check
          %p271 = pneg %p60
        $region42: #{tpu_custom_call.1} parent=39 // pred_check_branch
          %273 = sbr.rel (%p271) target = $region44
        $region43: #{tpu_custom_call.1} parent=39 // pred_region
          %274 = dma.done %s267, 256
        $region44: #{tpu_custom_call.1} parent=39 // pred_fallthru
          _
        %s275 = sand.u32 %s25, 1
        %s276 = scalar_lea.sflag [#allocation7], %s275
        %s277 = sand.u32 %s73, 1
        %s278 = smul.addr %s277, 256
        %s279 = scalar_lea.vmem [#allocation6], %s278
        // Predicated region
        $region45: #{tpu_custom_call.1} parent=39 // pred_check
          %p280 = pneg %p86
        $region46: #{tpu_custom_call.1} parent=39 // pred_check_branch
          %282 = sbr.rel (%p280) target = $region48
        $region47: #{tpu_custom_call.1} parent=39 // pred_region
          %283 = dma.done %s276, 4096
        $region48: #{tpu_custom_call.1} parent=39 // pred_fallthru
          _
        // Predicated region
        $region49: #{tpu_custom_call.1} parent=39 // pred_check
          %p284 = pneg %p128
        $region50: #{tpu_custom_call.1} parent=39 // pred_check_branch
          %286 = sbr.rel (%p284) target = $region52
        $region51: #{tpu_custom_call.1} parent=39 // pred_region
          %287 = dma.done [#allocation7], 2048
        $region52: #{tpu_custom_call.1} parent=39 // pred_fallthru
          _
        %s288 = sand.u32 %s47, 1
        %s289 = scalar_lea.sflag [#allocation4], %s288
        %s290 = sand.u32 %s47, 1
        %s291 = smul.addr %s290, 16
        %s292 = scalar_lea.vmem [#allocation3], %s291
        %p293 = pneg %p60
        %p294 = pneg %p57
        %s295 = sand.u32 %s25, 1
        %s296 = scalar_lea.sflag [#allocation7], %s295
        %s297 = sand.u32 %s73, 1
        %s298 = smul.addr %s297, 256
        %s299 = scalar_lea.vmem [#allocation6], %s298
        %p300 = pneg %p86
        %p301 = pneg %p83
        %p302 = pneg %p107
        %p303 = pneg %p104
        %p304 = pneg %p128
        %p305 = pneg %p125
        %p306 = pneg %p149
        %p307 = pneg %p146
        %p308 = pneg %p175
        %p309 = pneg %p172
        %s310 = sand.u32 %s162, 1
        %s311 = scalar_lea.sflag [#allocation5], %s310
        %s312 = sand.u32 %s162, 1
        %s313 = smul.addr %s312, 8
        %s314 = scalar_lea.vmem [#allocation9], %s313
        %s315 = smul.u32 2, %s29
        %s316 = smul.u32 2, %s30
        %s317 = smul.u32 32, %s30
        %s318 = smul.u32 2, %s29
        %p320 = scmp.eq.s32.totalorder %s30, 0
        // Predicated region
        $region53: #{tpu_custom_call.1} parent=39 // pred_check
          %p321 = pneg %p320
        $region54: #{tpu_custom_call.1} parent=39 // pred_check_branch
          %323 = sbr.rel (%p321) target = $region56
        $region55: #{tpu_custom_call.1} parent=39 // pred_region
          %324 = vst [vmem:[#allocation2] sm:$0xff] 0.0
          %325 = vst [vmem:[#allocation2 + $0x8] sm:$0xff] 0.0
          %326 = vst [vmem:[#allocation2 + $0x10] sm:$0xff] 0.0
          %327 = vst [vmem:[#allocation2 + $0x18] sm:$0xff] 0.0
        $region56: #{tpu_custom_call.1} parent=39 // pred_fallthru
          _
        %v328 = vld [vmem:[#allocation2] sm:$0xff]
        %v329 = vld [vmem:[#allocation2 + $0x8] sm:$0xff]
        %v330 = vld [vmem:[#allocation2 + $0x10] sm:$0xff]
        %v331 = vld [vmem:[#allocation2 + $0x18] sm:$0xff]
        %v332 = vld [vmem:[%s270] sm:$0xff]
        %v333 = vld [vmem:[%s270 + $0x8] sm:$0xff]
        %v334 = vld [vmem:[%s279] sm:$0xff]
        %v335 = vld [vmem:[%s279 + $0x8] sm:$0xff]
        %v336 = vld [vmem:[%s279 + $0x10] sm:$0xff]
        %v337 = vld [vmem:[%s279 + $0x18] sm:$0xff]
        %v338 = vld [vmem:[%s279 + $0x20] sm:$0xff]
        %v339 = vld [vmem:[%s279 + $0x28] sm:$0xff]
        %v340 = vld [vmem:[%s279 + $0x30] sm:$0xff]
        %v341 = vld [vmem:[%s279 + $0x38] sm:$0xff]
        %v342 = vld [vmem:[%s279 + $0x40] sm:$0xff]
        %v343 = vld [vmem:[%s279 + $0x48] sm:$0xff]
        %v344 = vld [vmem:[%s279 + $0x50] sm:$0xff]
        %v345 = vld [vmem:[%s279 + $0x58] sm:$0xff]
        %v346 = vld [vmem:[%s279 + $0x60] sm:$0xff]
        %v347 = vld [vmem:[%s279 + $0x68] sm:$0xff]
        %v348 = vld [vmem:[%s279 + $0x70] sm:$0xff]
        %v349 = vld [vmem:[%s279 + $0x78] sm:$0xff]
        %v350 = vld [vmem:[%s279 + $0x80] sm:$0xff]
        %v351 = vld [vmem:[%s279 + $0x88] sm:$0xff]
        %v352 = vld [vmem:[%s279 + $0x90] sm:$0xff]
        %v353 = vld [vmem:[%s279 + $0x98] sm:$0xff]
        %v354 = vld [vmem:[%s279 + $0xa0] sm:$0xff]
        %v355 = vld [vmem:[%s279 + $0xa8] sm:$0xff]
        %v356 = vld [vmem:[%s279 + $0xb0] sm:$0xff]
        %v357 = vld [vmem:[%s279 + $0xb8] sm:$0xff]
        %v358 = vld [vmem:[%s279 + $0xc0] sm:$0xff]
        %v359 = vld [vmem:[%s279 + $0xc8] sm:$0xff]
        %v360 = vld [vmem:[%s279 + $0xd0] sm:$0xff]
        %v361 = vld [vmem:[%s279 + $0xd8] sm:$0xff]
        %v362 = vld [vmem:[%s279 + $0xe0] sm:$0xff]
        %v363 = vld [vmem:[%s279 + $0xe8] sm:$0xff]
        %v364 = vld [vmem:[%s279 + $0xf0] sm:$0xff]
        %v365 = vld [vmem:[%s279 + $0xf8] sm:$0xff]
        %v368 = vunpack.c.l.b16 %v332
        %v369 = vunpack.c.h.b16 %v332
        %v370 = vunpack.c.l.b16 %v333
        %v371 = vunpack.c.h.b16 %v333
        %v372 = vpack.c.b16 %v370, %v368
        %v373 = vpack.c.b16 %v371, %v369
        %v408 = vunpack.c.l.b16 %v334
        %v409 = vunpack.c.h.b16 %v334
        %v410 = vunpack.c.l.b16 %v335
        %v411 = vunpack.c.h.b16 %v335
        %v412 = vunpack.c.l.b16 %v336
        %v413 = vunpack.c.h.b16 %v336
        %v414 = vunpack.c.l.b16 %v337
        %v415 = vunpack.c.h.b16 %v337
        %v416 = vunpack.c.l.b16 %v338
        %v417 = vunpack.c.h.b16 %v338
        %v418 = vunpack.c.l.b16 %v339
        %v419 = vunpack.c.h.b16 %v339
        %v420 = vunpack.c.l.b16 %v340
        %v421 = vunpack.c.h.b16 %v340
        %v422 = vunpack.c.l.b16 %v341
        %v423 = vunpack.c.h.b16 %v341
        %v424 = vunpack.c.l.b16 %v342
        %v425 = vunpack.c.h.b16 %v342
        %v426 = vunpack.c.l.b16 %v343
        %v427 = vunpack.c.h.b16 %v343
        %v428 = vunpack.c.l.b16 %v344
        %v429 = vunpack.c.h.b16 %v344
        %v430 = vunpack.c.l.b16 %v345
        %v431 = vunpack.c.h.b16 %v345
        %v432 = vunpack.c.l.b16 %v346
        %v433 = vunpack.c.h.b16 %v346
        %v434 = vunpack.c.l.b16 %v347
        %v435 = vunpack.c.h.b16 %v347
        %v436 = vunpack.c.l.b16 %v348
        %v437 = vunpack.c.h.b16 %v348
        %v438 = vunpack.c.l.b16 %v349
        %v439 = vunpack.c.h.b16 %v349
        %v440 = vunpack.c.l.b16 %v350
        %v441 = vunpack.c.h.b16 %v350
        %v442 = vunpack.c.l.b16 %v351
        %v443 = vunpack.c.h.b16 %v351
        %v444 = vunpack.c.l.b16 %v352
        %v445 = vunpack.c.h.b16 %v352
        %v446 = vunpack.c.l.b16 %v353
        %v447 = vunpack.c.h.b16 %v353
        %v448 = vunpack.c.l.b16 %v354
        %v449 = vunpack.c.h.b16 %v354
        %v450 = vunpack.c.l.b16 %v355
        %v451 = vunpack.c.h.b16 %v355
        %v452 = vunpack.c.l.b16 %v356
        %v453 = vunpack.c.h.b16 %v356
        %v454 = vunpack.c.l.b16 %v357
        %v455 = vunpack.c.h.b16 %v357
        %v456 = vunpack.c.l.b16 %v358
        %v457 = vunpack.c.h.b16 %v358
        %v458 = vunpack.c.l.b16 %v359
        %v459 = vunpack.c.h.b16 %v359
        %v460 = vunpack.c.l.b16 %v360
        %v461 = vunpack.c.h.b16 %v360
        %v462 = vunpack.c.l.b16 %v361
        %v463 = vunpack.c.h.b16 %v361
        %v464 = vunpack.c.l.b16 %v362
        %v465 = vunpack.c.h.b16 %v362
        %v466 = vunpack.c.l.b16 %v363
        %v467 = vunpack.c.h.b16 %v363
        %v468 = vunpack.c.l.b16 %v364
        %v469 = vunpack.c.h.b16 %v364
        %v470 = vunpack.c.l.b16 %v365
        %v471 = vunpack.c.h.b16 %v365
        %v472 = vpack.c.b16 %v410, %v408
        %v473 = vpack.c.b16 %v411, %v409
        %v474 = vpack.c.b16 %v414, %v412
        %v475 = vpack.c.b16 %v415, %v413
        %v476 = vpack.c.b16 %v418, %v416
        %v477 = vpack.c.b16 %v419, %v417
        %v478 = vpack.c.b16 %v422, %v420
        %v479 = vpack.c.b16 %v423, %v421
        %v480 = vpack.c.b16 %v426, %v424
        %v481 = vpack.c.b16 %v427, %v425
        %v482 = vpack.c.b16 %v430, %v428
        %v483 = vpack.c.b16 %v431, %v429
        %v484 = vpack.c.b16 %v434, %v432
        %v485 = vpack.c.b16 %v435, %v433
        %v486 = vpack.c.b16 %v438, %v436
        %v487 = vpack.c.b16 %v439, %v437
        %v488 = vpack.c.b16 %v442, %v440
        %v489 = vpack.c.b16 %v443, %v441
        %v490 = vpack.c.b16 %v446, %v444
        %v491 = vpack.c.b16 %v447, %v445
        %v492 = vpack.c.b16 %v450, %v448
        %v493 = vpack.c.b16 %v451, %v449
        %v494 = vpack.c.b16 %v454, %v452
        %v495 = vpack.c.b16 %v455, %v453
        %v496 = vpack.c.b16 %v458, %v456
        %v497 = vpack.c.b16 %v459, %v457
        %v498 = vpack.c.b16 %v462, %v460
        %v499 = vpack.c.b16 %v463, %v461
        %v500 = vpack.c.b16 %v466, %v464
        %v501 = vpack.c.b16 %v467, %v465
        %v502 = vpack.c.b16 %v470, %v468
        %v503 = vpack.c.b16 %v471, %v469
        %536 = vmatprep.subr.bf16.mxu0 %v473
        %537 = vmatpush1.bf16.msra.mxu0 %v472
        %538 = vmatprep.subr.bf16.mxu0 %v475
        %539 = vmatpush1.bf16.msra.mxu0 %v474
        %540 = vmatprep.subr.bf16.mxu0 %v477
        %541 = vmatpush1.bf16.msra.mxu0 %v476
        %542 = vmatprep.subr.bf16.mxu0 %v479
        %543 = vmatpush1.bf16.msra.mxu0 %v478
        %544 = vmatprep.subr.bf16.mxu0 %v481
        %545 = vmatpush1.bf16.msra.mxu0 %v480
        %546 = vmatprep.subr.bf16.mxu0 %v483
        %547 = vmatpush1.bf16.msra.mxu0 %v482
        %548 = vmatprep.subr.bf16.mxu0 %v485
        %549 = vmatpush1.bf16.msra.mxu0 %v484
        %550 = vmatprep.subr.bf16.mxu0 %v487
        %551 = vmatpush1.bf16.msra.mxu0 %v486
        %552 = vmatprep.subr.bf16.mxu0 %v489
        %553 = vmatpush1.bf16.msra.mxu0 %v488
        %554 = vmatprep.subr.bf16.mxu0 %v491
        %555 = vmatpush1.bf16.msra.mxu0 %v490
        %556 = vmatprep.subr.bf16.mxu0 %v493
        %557 = vmatpush1.bf16.msra.mxu0 %v492
        %558 = vmatprep.subr.bf16.mxu0 %v495
        %559 = vmatpush1.bf16.msra.mxu0 %v494
        %560 = vmatprep.subr.bf16.mxu0 %v497
        %561 = vmatpush1.bf16.msra.mxu0 %v496
        %562 = vmatprep.subr.bf16.mxu0 %v499
        %563 = vmatpush1.bf16.msra.mxu0 %v498
        %564 = vmatprep.subr.bf16.mxu0 %v501
        %565 = vmatpush1.bf16.msra.mxu0 %v500
        %566 = vmatprep.subr.bf16.mxu0 %v503
        %567 = vmatpush1.bf16.msra.mxu0 %v502
        %568 = vmatprep.mubr.bf16.mxu0 %v373
        %569 = vmatmul.mubr.bf16.gmra.mrb[0].mxu0 %v372
        %v570 = vpop.f32.mrb[0].mxu0
        %v571 = vadd.f32 0.0, %v570
        %v572 = vpop.f32.mrb[0].mxu0
        %v573 = vadd.f32 0.0, %v572
        %v574 = vpop.f32.mrb[0].mxu0
        %v575 = vadd.f32 0.0, %v574
        %v576 = vpop.f32.mrb[0].mxu0
        %v577 = vadd.f32 0.0, %v576
        %578 = vdwg.mxu0
        %v579 = vadd.f32 %v328, %v571
        %v580 = vadd.f32 %v329, %v573
        %v581 = vadd.f32 %v330, %v575
        %v582 = vadd.f32 %v331, %v577
        %583 = vst [vmem:[#allocation2] sm:$0xff] %v579
        %584 = vst [vmem:[#allocation2 + $0x8] sm:$0xff] %v580
        %585 = vst [vmem:[#allocation2 + $0x10] sm:$0xff] %v581
        %586 = vst [vmem:[#allocation2 + $0x18] sm:$0xff] %v582
        %p587 = scmp.eq.s32.totalorder %s30, 1
        // Predicated region
        $region57: #{tpu_custom_call.1} parent=39 // pred_check
          %p588 = pneg %p587
        $region58: #{tpu_custom_call.1} parent=39 // pred_check_branch
          %590 = sbr.rel (%p588) target = $region60
        $region59: #{tpu_custom_call.1} parent=39 // pred_region
          %v591 = vld [vmem:[#allocation2] sm:$0xff]
          %v592 = vld [vmem:[#allocation2 + $0x8] sm:$0xff]
          %v593 = vld [vmem:[#allocation2 + $0x10] sm:$0xff]
          %v594 = vld [vmem:[#allocation2 + $0x18] sm:$0xff]
          %v595 = vld [vmem:[%s2] sm:$0x3]
          %v597 = vlaneseq
          %v598 = vshrl.u32 %v597, 7
          %v599 = vsub.s32 0, %v598
          %v600 = vrot.slane %v595, %v599
          %v601 = vlaneseq
          %v602 = vshrl.u32 %v601, 7
          %v603 = vsub.s32 1, %v602
          %v604 = vrot.slane %v595, %v603
          %v607 = vadd.f32 %v591, %v600
          %v608 = vadd.f32 %v592, %v604
          %v609 = vadd.f32 %v593, %v600
          %v610 = vadd.f32 %v594, %v604
          %v611 = vmax.f32 %v607, 0.0
          %v612 = vmax.f32 %v608, 0.0
          %v613 = vmax.f32 %v609, 0.0
          %v614 = vmax.f32 %v610, 0.0
          %v615 = vpack.c.bf16 %v613, %v611
          %v616 = vpack.c.bf16 %v614, %v612
          %v617 = vld [vmem:[#allocation8] sm:$0xf]
          %v618 = vld [vmem:[#allocation8 + $0x4] sm:$0xf]
          %v619 = vld [vmem:[#allocation8 + $0x8] sm:$0xf]
          %v620 = vld [vmem:[#allocation8 + $0xc] sm:$0xf]
          %v621 = vld [vmem:[#allocation8 + $0x10] sm:$0xf]
          %v622 = vld [vmem:[#allocation8 + $0x14] sm:$0xf]
          %v623 = vld [vmem:[#allocation8 + $0x18] sm:$0xf]
          %v624 = vld [vmem:[#allocation8 + $0x1c] sm:$0xf]
          %v625 = vld [vmem:[#allocation8 + $0x20] sm:$0xf]
          %v626 = vld [vmem:[#allocation8 + $0x24] sm:$0xf]
          %v627 = vld [vmem:[#allocation8 + $0x28] sm:$0xf]
          %v628 = vld [vmem:[#allocation8 + $0x2c] sm:$0xf]
          %v629 = vld [vmem:[#allocation8 + $0x30] sm:$0xf]
          %v630 = vld [vmem:[#allocation8 + $0x34] sm:$0xf]
          %v631 = vld [vmem:[#allocation8 + $0x38] sm:$0xf]
          %v632 = vld [vmem:[#allocation8 + $0x3c] sm:$0xf]
          %v633 = vld [vmem:[#allocation8 + $0x40] sm:$0xf]
          %v634 = vld [vmem:[#allocation8 + $0x44] sm:$0xf]
          %v635 = vld [vmem:[#allocation8 + $0x48] sm:$0xf]
          %v636 = vld [vmem:[#allocation8 + $0x4c] sm:$0xf]
          %v637 = vld [vmem:[#allocation8 + $0x50] sm:$0xf]
          %v638 = vld [vmem:[#allocation8 + $0x54] sm:$0xf]
          %v639 = vld [vmem:[#allocation8 + $0x58] sm:$0xf]
          %v640 = vld [vmem:[#allocation8 + $0x5c] sm:$0xf]
          %v641 = vld [vmem:[#allocation8 + $0x60] sm:$0xf]
          %v642 = vld [vmem:[#allocation8 + $0x64] sm:$0xf]
          %v643 = vld [vmem:[#allocation8 + $0x68] sm:$0xf]
          %v644 = vld [vmem:[#allocation8 + $0x6c] sm:$0xf]
          %v645 = vld [vmem:[#allocation8 + $0x70] sm:$0xf]
          %v646 = vld [vmem:[#allocation8 + $0x74] sm:$0xf]
          %v647 = vld [vmem:[#allocation8 + $0x78] sm:$0xf]
          %v648 = vld [vmem:[#allocation8 + $0x7c] sm:$0xf]
          %v649 = vld [vmem:[%s4] sm:$0x1]
          %v651 = vlaneseq
          %v652 = vshrl.u32 %v651, 7
          %v653 = vsub.s32 0, %v652
          %v654 = vrot.slane %v649, %v653
          %v688 = vunpack.c.l.b16 %v617
          %v689 = vunpack.c.l.b16 %v618
          %v690 = vunpack.c.l.b16 %v619
          %v691 = vunpack.c.l.b16 %v620
          %v692 = vunpack.c.l.b16 %v621
          %v693 = vunpack.c.l.b16 %v622
          %v694 = vunpack.c.l.b16 %v623
          %v695 = vunpack.c.l.b16 %v624
          %v696 = vunpack.c.l.b16 %v625
          %v697 = vunpack.c.l.b16 %v626
          %v698 = vunpack.c.l.b16 %v627
          %v699 = vunpack.c.l.b16 %v628
          %v700 = vunpack.c.l.b16 %v629
          %v701 = vunpack.c.l.b16 %v630
          %v702 = vunpack.c.l.b16 %v631
          %v703 = vunpack.c.l.b16 %v632
          %v704 = vunpack.c.l.b16 %v633
          %v705 = vunpack.c.l.b16 %v634
          %v706 = vunpack.c.l.b16 %v635
          %v707 = vunpack.c.l.b16 %v636
          %v708 = vunpack.c.l.b16 %v637
          %v709 = vunpack.c.l.b16 %v638
          %v710 = vunpack.c.l.b16 %v639
          %v711 = vunpack.c.l.b16 %v640
          %v712 = vunpack.c.l.b16 %v641
          %v713 = vunpack.c.l.b16 %v642
          %v714 = vunpack.c.l.b16 %v643
          %v715 = vunpack.c.l.b16 %v644
          %v716 = vunpack.c.l.b16 %v645
          %v717 = vunpack.c.l.b16 %v646
          %v718 = vunpack.c.l.b16 %v647
          %v719 = vunpack.c.l.b16 %v648
          %v720 = vpack.c.b16 %v689, %v688
          %v721 = vpack.c.b16 %v691, %v690
          %v722 = vpack.c.b16 %v693, %v692
          %v723 = vpack.c.b16 %v695, %v694
          %v724 = vpack.c.b16 %v697, %v696
          %v725 = vpack.c.b16 %v699, %v698
          %v726 = vpack.c.b16 %v701, %v700
          %v727 = vpack.c.b16 %v703, %v702
          %v728 = vpack.c.b16 %v705, %v704
          %v729 = vpack.c.b16 %v707, %v706
          %v730 = vpack.c.b16 %v709, %v708
          %v731 = vpack.c.b16 %v711, %v710
          %v732 = vpack.c.b16 %v713, %v712
          %v733 = vpack.c.b16 %v715, %v714
          %v734 = vpack.c.b16 %v717, %v716
          %v735 = vpack.c.b16 %v719, %v718
          %752 = vmatprep.subr.bf16.mxu0 0
          %753 = vmatpush1.bf16.msra.mxu0 %v720
          %754 = vmatprep.subr.bf16.mxu0 0
          %755 = vmatpush1.bf16.msra.mxu0 %v721
          %756 = vmatprep.subr.bf16.mxu0 0
          %757 = vmatpush1.bf16.msra.mxu0 %v722
          %758 = vmatprep.subr.bf16.mxu0 0
          %759 = vmatpush1.bf16.msra.mxu0 %v723
          %760 = vmatprep.subr.bf16.mxu0 0
          %761 = vmatpush1.bf16.msra.mxu0 %v724
          %762 = vmatprep.subr.bf16.mxu0 0
          %763 = vmatpush1.bf16.msra.mxu0 %v725
          %764 = vmatprep.subr.bf16.mxu0 0
          %765 = vmatpush1.bf16.msra.mxu0 %v726
          %766 = vmatprep.subr.bf16.mxu0 0
          %767 = vmatpush1.bf16.msra.mxu0 %v727
          %768 = vmatprep.subr.bf16.mxu0 0
          %769 = vmatpush1.bf16.msra.mxu0 %v728
          %770 = vmatprep.subr.bf16.mxu0 0
          %771 = vmatpush1.bf16.msra.mxu0 %v729
          %772 = vmatprep.subr.bf16.mxu0 0
          %773 = vmatpush1.bf16.msra.mxu0 %v730
          %774 = vmatprep.subr.bf16.mxu0 0
          %775 = vmatpush1.bf16.msra.mxu0 %v731
          %776 = vmatprep.subr.bf16.mxu0 0
          %777 = vmatpush1.bf16.msra.mxu0 %v732
          %778 = vmatprep.subr.bf16.mxu0 0
          %779 = vmatpush1.bf16.msra.mxu0 %v733
          %780 = vmatprep.subr.bf16.mxu0 0
          %781 = vmatpush1.bf16.msra.mxu0 %v734
          %782 = vmatprep.subr.bf16.mxu0 0
          %783 = vmatpush1.bf16.msra.mxu0 %v735
          %784 = vmatprep.mubr.bf16.mxu0 %v616
          %785 = vmatmul.mubr.bf16.gmra.mrb[0].mxu0 %v615
          %v786 = vpop.f32.mrb[0].mxu0
          %v787 = vadd.f32 %v654, %v786
          %v788 = vpop.f32.mrb[0].mxu0
          %v789 = vpop.f32.mrb[0].mxu0
          %v790 = vadd.f32 %v654, %v789
          %v791 = vpop.f32.mrb[0].mxu0
          %792 = vdwg.mxu0
          %v793 = vpack.c.bf16 %v790, %v787
          %v795 = vunpack.c.l.b16 %v793
          %v796 = vunpack.c.h.b16 %v793
          %v797 = vpack.c.b16 %v795, %v795
          %v798 = vpack.c.b16 %v796, %v796
          %801 = vst [vmem:[%s314] sm:$0xf] %v797
          %802 = vst [vmem:[%s314 + $0x4] sm:$0xf] %v798
        $region60: #{tpu_custom_call.1} parent=39 // pred_fallthru
          _
        %s803 = sand.u32 %s162, 1
        %s804 = scalar_lea.sflag [#allocation5], %s803
        %s805 = sand.u32 %s162, 1
        %s806 = smul.addr %s805, 8
        %s807 = scalar_lea.vmem [#allocation9], %s806
        // Predicated region
        $region61: #{tpu_custom_call.1} parent=39 // pred_check
          %p808 = pneg %p172
        $region62: #{tpu_custom_call.1} parent=39 // pred_check_branch
          %810 = sbr.rel (%p808) target = $region64
        $region63: #{tpu_custom_call.1} parent=39 // pred_region
          %s811 = smul.u32 2, %s29
          %s813 = ssub.s32 128, 128
          %814 = vsyncadd %s804, %s813
          %s815 = smul.addr %s811, 64
          %s816 = scalar_lea.hbm %s5, %s815
          %s817 = sshll.u32 %s807, 4
          %s818 = int_to_ptr.vmem [resolvable:$true] %s817
          %823 = dma.vmem_to_hbm [thread:$0]  %s818, 128, %s816, %s804, 64, 64, 4
        $region64: #{tpu_custom_call.1} parent=39 // pred_fallthru
          _
      $region40: #{tpu_custom_call.1} parent=5 // pred_fallthru
        _
      %p824 = scmp.le.s32.totalorder 2, %s20
      // Predicated region
      $region65: #{tpu_custom_call.1} parent=5 // pred_check
        %p825 = pneg %p824
      $region66: #{tpu_custom_call.1} parent=5 // pred_check_branch
        %827 = sbr.rel (%p825) target = $region68
      $region67: #{tpu_custom_call.1} parent=5 // pred_region
        %s828 = ssub.s32 %s20, 2
        // Predicated region
        $region69: #{tpu_custom_call.1} parent=67 // pred_check
          %p829 = pneg %p178
        $region70: #{tpu_custom_call.1} parent=67 // pred_check_branch
          %831 = sbr.rel (%p829) target = $region72
        $region71: #{tpu_custom_call.1} parent=67 // pred_region
          %s832 = sand.u32 %s163, 1
          %s833 = scalar_lea.sflag [#allocation5], %s832
          %s834 = sand.u32 %s163, 1
          %s835 = smul.addr %s834, 8
          %s836 = scalar_lea.vmem [#allocation9], %s835
          %837 = dma.done %s833, 128
        $region72: #{tpu_custom_call.1} parent=67 // pred_fallthru
          _
      $region68: #{tpu_custom_call.1} parent=5 // pred_fallthru
        _
    $region6: #{tpu_custom_call.1} parent=1 // loop_footer
      %s24 = sadd.s32 1, %s20
    $region7: #{tpu_custom_call.1} parent=1 // loop_footer_branch
      %19 = sbr.rel target = $region3
    $region8: #{tpu_custom_call.1} parent=1 // loop_exit
      _
    %838 = vsyncpa [#allocation4], 1
    %s839 = scalar_lea.sflag [#allocation4], 1
    %840 = vsyncpa %s839, 1
    %841 = vsyncpa [#allocation7], 1
    %s842 = scalar_lea.sflag [#allocation7], 1
    %843 = vsyncpa %s842, 1
    %844 = vsyncpa [#allocation5], 1
    %s845 = scalar_lea.sflag [#allocation5], 1
    %846 = vsyncpa %s845, 1

// kernel: tpu_custom_call.1
$region0: #{tpu_custom_call.1}
  #allocation0 [shape = 'u32[]', space=smem, size = 0x4, offset = 0x4, fixed_abs, tag = 'smem constant byte address 0x4 - core index']
  #allocation1 [shape = 'u32[144,128]{1,0:T(1,128)}', space=vmem, size = 0x12000, scoped, tag = 'internal scratch']
  #allocation2 [shape = 'f32[16,256]{1,0:T(8,128)}', space=vmem, size = 0x4000, scoped, tag = 'scratch operand']
  %s0 = inlined_call_operand.hbm [shape: bf16[48,512], index: 0, kind: input, shape index: {}]
  %s1 = inlined_call_operand.hbm [shape: bf16[512,256], index: 1, kind: input, shape index: {}]
  %s2 = inlined_call_operand.vmem [shape: f32[1,256], index: 2, kind: input, shape index: {}]
  %s3 = inlined_call_operand.hbm [shape: bf16[256,128], index: 3, kind: input, shape index: {}]
  %s4 = inlined_call_operand.vmem [shape: f32[1,128], index: 4, kind: input, shape index: {}]
  %s5 = inlined_call_operand.hbm [shape: bf16[48,128], index: 5, kind: output, shape index: {}]
  %s6 = sld [smem:[#allocation0]]
  $region73: #{tpu_custom_call.1} parent=0
    _
  %s8 = ssub.s32 1, %s6
  %s9 = scalar_select 0, %s8, %s6
  $region1: #{tpu_custom_call.1} parent=0
    #allocation3 [shape = 'u8[16384]{0}', space=vmem, size = 0x4000, scoped, tag = 'input window, operand 0']
    #allocation4 [shape = 's32[2]{0}', space=sflag, size = 0x8, scoped, tag = 'scoped memory for tpu_custom_call.1']
    #allocation5 [shape = 's32[2]{0}', space=sflag, size = 0x8, scoped, tag = 'scoped memory for tpu_custom_call.1']
    #allocation6 [shape = 'u8[262144]{0}', space=vmem, size = 0x40000, scoped, tag = 'input window, operand 1']
    #allocation7 [shape = 's32[2]{0}', space=sflag, size = 0x8, scoped, tag = 'scoped memory for tpu_custom_call.1']
    #allocation8 [shape = 'u8[65536]{0}', space=vmem, size = 0x10000, scoped, tag = 'input window, operand 3, single buffered']
    #allocation9 [shape = 'u8[8192]{0}', space=vmem, size = 0x2000, scoped, tag = 'output window, operand 0']
    %10 = vsyncpa [#allocation4], 0
    %s11 = scalar_lea.sflag [#allocation4], 1
    %12 = vsyncpa %s11, 0
    %13 = vsyncpa [#allocation7], 0
    %s14 = scalar_lea.sflag [#allocation7], 1
    %15 = vsyncpa %s14, 0
    %16 = vsyncpa [#allocation5], 0
    %s17 = scalar_lea.sflag [#allocation5], 1
    %18 = vsyncpa %s17, 0
    loop: start=0, step=1, limit=8
    $region2: #{tpu_custom_call.1} parent=1 // loop_pre_header
      _
    $region3: #{tpu_custom_call.1} parent=1 // loop_header
      %s20 = sphi 0, %s24
      %p21 = scmp.ge.s32.totalorder %s20, 8
      %s27 = sphi 0, %s39
      %s28 = sphi 0, %s35
      %s29 = sphi 0, %s27
      %s30 = sphi 0, %s28
      %s31 = sphi 0, %s29
      %s32 = sphi 0, %s30
      %s44 = sphi 0, %s46
      %s47 = sphi 0, %s44
      %s48 = sphi 0, %s47
      %s64 = sphi 0, %s48
      %s70 = sphi 0, %s72
      %s73 = sphi 0, %s70
      %s74 = sphi 0, %s73
      %s90 = sphi 0, %s74
      %s94 = sphi 0, %s94
      %s96 = sphi 0, %s94
      %s97 = sphi 0, %s96
      %s111 = sphi 0, %s97
      %s115 = sphi 0, %s115
      %s117 = sphi 0, %s115
      %s118 = sphi 0, %s117
      %s132 = sphi 0, %s118
      %s136 = sphi 0, %s136
      %s138 = sphi 0, %s136
      %s139 = sphi 0, %s138
      %s153 = sphi 0, %s139
      %s159 = sphi 0, %s161
      %s162 = sphi 0, %s159
      %s163 = sphi 0, %s162
      %s179 = sphi 0, %s163
    $region4: #{tpu_custom_call.1} parent=1 // loop_header_branch
      %23 = sbr.rel (%p21) target = $region8
    $region5: #{tpu_custom_call.1} parent=1 // loop_body
      %s25 = ssub.s32 %s20, 1
      %s26 = ssub.s32 %s20, 2
      %s33 = sadd.s32 1, %s28
      %p34 = scmp.ge.s32.totalorder %s33, 2
      %s35 = scalar_select %p34, 0, %s33
      %s36 = sadd.s32 1, %s27
      %s37 = scalar_select %p34, %s36, %s27
      %p38 = scmp.ge.s32.totalorder %s37, 3
      %s39 = scalar_select %p38, 0, %s37
      %s40 = ssub.s32 %s27, %s39
      %s41 = ssub.s32 %s28, %s35
      %s42 = sor.u32 %s40, %s41
      %p43 = scmp.eq.s32.totalorder %s42, 0
      %s45 = sadd.s32 %s44, 1
      %s46 = scalar_select %p43, %s44, %s45
      %p49 = pneg %p43
      %p50 = scmp.eq.s32.totalorder %s20, 5
      %p51 = por %p49, %p50
      %p52 = scmp.ne.s32.totalorder %s44, %s47
      %p53 = scmp.eq.s32.totalorder %s20, 0
      %p54 = por %p52, %p53
      %p55 = scmp.ne.s32.totalorder %s44, %s47
      %p56 = scmp.eq.s32.totalorder %s25, 5
      %p57 = por %p55, %p56
      %p58 = scmp.ne.s32.totalorder %s47, %s48
      %p59 = scmp.eq.s32.totalorder %s25, 0
      %p60 = por %p58, %p59
      %p61 = scmp.ne.s32.totalorder %s47, %s48
      %p62 = scmp.eq.s32.totalorder %s26, 5
      %p63 = por %p61, %p62
      %p65 = scmp.ne.s32.totalorder %s48, %s64
      %p66 = scmp.eq.s32.totalorder %s26, 0
      %p67 = por %p65, %p66
      %s68 = ssub.s32 %s28, %s35
      %p69 = scmp.eq.s32.totalorder %s68, 0
      %s71 = sadd.s32 %s70, 1
      %s72 = scalar_select %p69, %s70, %s71
      %p75 = pneg %p69
      %p76 = scmp.eq.s32.totalorder %s20, 5
      %p77 = por %p75, %p76
      %p78 = scmp.ne.s32.totalorder %s70, %s73
      %p79 = scmp.eq.s32.totalorder %s20, 0
      %p80 = por %p78, %p79
      %p81 = scmp.ne.s32.totalorder %s70, %s73
      %p82 = scmp.eq.s32.totalorder %s25, 5
      %p83 = por %p81, %p82
      %p84 = scmp.ne.s32.totalorder %s73, %s74
      %p85 = scmp.eq.s32.totalorder %s25, 0
      %p86 = por %p84, %p85
      %p87 = scmp.ne.s32.totalorder %s73, %s74
      %p88 = scmp.eq.s32.totalorder %s26, 5
      %p89 = por %p87, %p88
      %p91 = scmp.ne.s32.totalorder %s74, %s90
      %p92 = scmp.eq.s32.totalorder %s26, 0
      %p93 = por %p91, %p92
      %s95 = sadd.s32 %s94, 1
      %p98 = scmp.eq.s32.totalorder %s20, 5
      %p99 = scmp.ne.s32.totalorder %s94, %s96
      %p100 = scmp.eq.s32.totalorder %s20, 0
      %p101 = por %p99, %p100
      %p102 = scmp.ne.s32.totalorder %s94, %s96
      %p103 = scmp.eq.s32.totalorder %s25, 5
      %p104 = por %p102, %p103
      %p105 = scmp.ne.s32.totalorder %s96, %s97
      %p106 = scmp.eq.s32.totalorder %s25, 0
      %p107 = por %p105, %p106
      %p108 = scmp.ne.s32.totalorder %s96, %s97
      %p109 = scmp.eq.s32.totalorder %s26, 5
      %p110 = por %p108, %p109
      %p112 = scmp.ne.s32.totalorder %s97, %s111
      %p113 = scmp.eq.s32.totalorder %s26, 0
      %p114 = por %p112, %p113
      %s116 = sadd.s32 %s115, 1
      %p119 = scmp.eq.s32.totalorder %s20, 5
      %p120 = scmp.ne.s32.totalorder %s115, %s117
      %p121 = scmp.eq.s32.totalorder %s20, 0
      %p122 = por %p120, %p121
      %p123 = scmp.ne.s32.totalorder %s115, %s117
      %p124 = scmp.eq.s32.totalorder %s25, 5
      %p125 = por %p123, %p124
      %p126 = scmp.ne.s32.totalorder %s117, %s118
      %p127 = scmp.eq.s32.totalorder %s25, 0
      %p128 = por %p126, %p127
      %p129 = scmp.ne.s32.totalorder %s117, %s118
      %p130 = scmp.eq.s32.totalorder %s26, 5
      %p131 = por %p129, %p130
      %p133 = scmp.ne.s32.totalorder %s118, %s132
      %p134 = scmp.eq.s32.totalorder %s26, 0
      %p135 = por %p133, %p134
      %s137 = sadd.s32 %s136, 1
      %p140 = scmp.eq.s32.totalorder %s20, 5
      %p141 = scmp.ne.s32.totalorder %s136, %s138
      %p142 = scmp.eq.s32.totalorder %s20, 0
      %p143 = por %p141, %p142
      %p144 = scmp.ne.s32.totalorder %s136, %s138
      %p145 = scmp.eq.s32.totalorder %s25, 5
      %p146 = por %p144, %p145
      %p147 = scmp.ne.s32.totalorder %s138, %s139
      %p148 = scmp.eq.s32.totalorder %s25, 0
      %p149 = por %p147, %p148
      %p150 = scmp.ne.s32.totalorder %s138, %s139
      %p151 = scmp.eq.s32.totalorder %s26, 5
      %p152 = por %p150, %p151
      %p154 = scmp.ne.s32.totalorder %s139, %s153
      %p155 = scmp.eq.s32.totalorder %s26, 0
      %p156 = por %p154, %p155
      %s157 = ssub.s32 %s27, %s39
      %p158 = scmp.eq.s32.totalorder %s157, 0
      %s160 = sadd.s32 %s159, 1
      %s161 = scalar_select %p158, %s159, %s160
      %p164 = pneg %p158
      %p165 = scmp.eq.s32.totalorder %s20, 5
      %p166 = por %p164, %p165
      %p167 = scmp.ne.s32.totalorder %s159, %s162
      %p168 = scmp.eq.s32.totalorder %s20, 0
      %p169 = por %p167, %p168
      %p170 = scmp.ne.s32.totalorder %s159, %s162
      %p171 = scmp.eq.s32.totalorder %s25, 5
      %p172 = por %p170, %p171
      %p173 = scmp.ne.s32.totalorder %s162, %s163
      %p174 = scmp.eq.s32.totalorder %s25, 0
      %p175 = por %p173, %p174
      %p176 = scmp.ne.s32.totalorder %s162, %s163
      %p177 = scmp.eq.s32.totalorder %s26, 5
      %p178 = por %p176, %p177
      %p180 = scmp.ne.s32.totalorder %s163, %s179
      %p181 = scmp.eq.s32.totalorder %s26, 0
      %p182 = por %p180, %p181
      %p183 = scmp.le.s32.totalorder 1, %s20
      %p184 = scmp.lt.s32.totalorder %s20, 7
      %p185 = pnand %p183, %p184
      %p186 = pneg %p185
      // Predicated region
      $region9: #{tpu_custom_call.1} parent=5 // pred_check
        _
      $region10: #{tpu_custom_call.1} parent=5 // pred_check_branch
        %188 = sbr.rel (%p185) target = $region12
      $region11: #{tpu_custom_call.1} parent=5 // pred_region
        %s189 = ssub.s32 %s20, 1
        // Predicated region
        $region13: #{tpu_custom_call.1} parent=11 // pred_check
          %p190 = pneg %p107
        $region14: #{tpu_custom_call.1} parent=11 // pred_check_branch
          %192 = sbr.rel (%p190) target = $region16
        $region15: #{tpu_custom_call.1} parent=11 // pred_region
          _
        $region16: #{tpu_custom_call.1} parent=11 // pred_fallthru
          _
        // Predicated region
        $region17: #{tpu_custom_call.1} parent=11 // pred_check
          %p193 = pneg %p128
        $region18: #{tpu_custom_call.1} parent=11 // pred_check_branch
          %195 = sbr.rel (%p193) target = $region20
        $region19: #{tpu_custom_call.1} parent=11 // pred_region
          %s197 = ssub.s32 2048, 2048
          %198 = vsyncadd [#allocation7], %s197
          %s199 = sshll.u32 [#allocation8], 4
          %s200 = int_to_ptr.vmem [resolvable:$true] %s199
          %205 = dma.hbm_to_vmem [thread:$0]  %s3, 2048, %s200, [#allocation7], 64, 64, 4
        $region20: #{tpu_custom_call.1} parent=11 // pred_fallthru
          _
        // Predicated region
        $region21: #{tpu_custom_call.1} parent=11 // pred_check
          %p206 = pneg %p149
        $region22: #{tpu_custom_call.1} parent=11 // pred_check_branch
          %208 = sbr.rel (%p206) target = $region24
        $region23: #{tpu_custom_call.1} parent=11 // pred_region
          _
        $region24: #{tpu_custom_call.1} parent=11 // pred_fallthru
          _
      $region12: #{tpu_custom_call.1} parent=5 // pred_fallthru
        _
      %p209 = scmp.lt.s32.totalorder %s20, 6
      // Predicated region
      $region25: #{tpu_custom_call.1} parent=5 // pred_check
        %p210 = pneg %p209
      $region26: #{tpu_custom_call.1} parent=5 // pred_check_branch
        %212 = sbr.rel (%p210) target = $region28
      $region27: #{tpu_custom_call.1} parent=5 // pred_region
        // Predicated region
        $region29: #{tpu_custom_call.1} parent=27 // pred_check
          %p213 = pneg %p54
        $region30: #{tpu_custom_call.1} parent=27 // pred_check_branch
          %215 = sbr.rel (%p213) target = $region32
        $region31: #{tpu_custom_call.1} parent=27 // pred_region
          %s216 = sand.u32 %s44, 1
          %s217 = scalar_lea.sflag [#allocation4], %s216
          %s218 = sand.u32 %s44, 1
          %s219 = smul.addr %s218, 16
          %s220 = scalar_lea.vmem [#allocation3], %s219
          %s221 = smul.u32 2, %s27
          %s222 = smul.u32 2, %s28
          %s224 = ssub.s32 256, 256
          %225 = vsyncadd %s217, %s224
          %s226 = smul.addr %s221, 4
          %s227 = sadd.s32 %s222, %s226
          %s228 = smul.addr %s227, 64
          %s229 = scalar_lea.hbm %s0, %s228
          %s230 = sshll.u32 %s220, 4
          %s231 = int_to_ptr.vmem [resolvable:$true] %s230
          %236 = dma.hbm_to_vmem [thread:$0]  %s229, 256, %s231, %s217, 256, 128, 8
        $region32: #{tpu_custom_call.1} parent=27 // pred_fallthru
          _
        // Predicated region
        $region33: #{tpu_custom_call.1} parent=27 // pred_check
          %p237 = pneg %p80
        $region34: #{tpu_custom_call.1} parent=27 // pred_check_branch
          %239 = sbr.rel (%p237) target = $region36
        $region35: #{tpu_custom_call.1} parent=27 // pred_region
          %s240 = sand.u32 %s20, 1
          %s241 = scalar_lea.sflag [#allocation7], %s240
          %s242 = sand.u32 %s70, 1
          %s243 = smul.addr %s242, 256
          %s244 = scalar_lea.vmem [#allocation6], %s243
          %s245 = smul.u32 32, %s28
          %s247 = ssub.s32 4096, 4096
          %248 = vsyncadd %s241, %s247
          %s249 = smul.addr %s245, 2
          %s250 = smul.addr %s249, 64
          %s251 = scalar_lea.hbm %s1, %s250
          %s252 = sshll.u32 %s244, 4
          %s253 = int_to_ptr.vmem [resolvable:$true] %s252
          %258 = dma.hbm_to_vmem [thread:$0]  %s251, 4096, %s253, %s241, 128, 128, 8
        $region36: #{tpu_custom_call.1} parent=27 // pred_fallthru
          _
      $region28: #{tpu_custom_call.1} parent=5 // pred_fallthru
        _
      %p259 = scmp.le.s32.totalorder 1, %s20
      %p260 = scmp.lt.s32.totalorder %s20, 7
      %p261 = pnand %p259, %p260
      %p262 = pneg %p261
      // Predicated region
      $region37: #{tpu_custom_call.1} parent=5 // pred_check
        _
      $region38: #{tpu_custom_call.1} parent=5 // pred_check_branch
        %264 = sbr.rel (%p261) target = $region40
      $region39: #{tpu_custom_call.1} parent=5 // pred_region
        %s265 = ssub.s32 %s20, 1
        %s266 = sand.u32 %s47, 1
        %s267 = scalar_lea.sflag [#allocation4], %s266
        %s268 = sand.u32 %s47, 1
        %s269 = smul.addr %s268, 16
        %s270 = scalar_lea.vmem [#allocation3], %s269
        // Predicated region
        $region41: #{tpu_custom_call.1} parent=39 // pred_check
          %p271 = pneg %p60
        $region42: #{tpu_custom_call.1} parent=39 // pred_check_branch
          %273 = sbr.rel (%p271) target = $region44
        $region43: #{tpu_custom_call.1} parent=39 // pred_region
          %274 = dma.done %s267, 256
        $region44: #{tpu_custom_call.1} parent=39 // pred_fallthru
          _
        %s275 = sand.u32 %s25, 1
        %s276 = scalar_lea.sflag [#allocation7], %s275
        %s277 = sand.u32 %s73, 1
        %s278 = smul.addr %s277, 256
        %s279 = scalar_lea.vmem [#allocation6], %s278
        // Predicated region
        $region45: #{tpu_custom_call.1} parent=39 // pred_check
          %p280 = pneg %p86
        $region46: #{tpu_custom_call.1} parent=39 // pred_check_branch
          %282 = sbr.rel (%p280) target = $region48
        $region47: #{tpu_custom_call.1} parent=39 // pred_region
          %283 = dma.done %s276, 4096
        $region48: #{tpu_custom_call.1} parent=39 // pred_fallthru
          _
        // Predicated region
        $region49: #{tpu_custom_call.1} parent=39 // pred_check
          %p284 = pneg %p128
        $region50: #{tpu_custom_call.1} parent=39 // pred_check_branch
          %286 = sbr.rel (%p284) target = $region52
        $region51: #{tpu_custom_call.1} parent=39 // pred_region
          %287 = dma.done [#allocation7], 2048
        $region52: #{tpu_custom_call.1} parent=39 // pred_fallthru
          _
        %s288 = sand.u32 %s47, 1
        %s289 = scalar_lea.sflag [#allocation4], %s288
        %s290 = sand.u32 %s47, 1
        %s291 = smul.addr %s290, 16
        %s292 = scalar_lea.vmem [#allocation3], %s291
        %p293 = pneg %p60
        %p294 = pneg %p57
        %s295 = sand.u32 %s25, 1
        %s296 = scalar_lea.sflag [#allocation7], %s295
        %s297 = sand.u32 %s73, 1
        %s298 = smul.addr %s297, 256
        %s299 = scalar_lea.vmem [#allocation6], %s298
        %p300 = pneg %p86
        %p301 = pneg %p83
        %p302 = pneg %p107
        %p303 = pneg %p104
        %p304 = pneg %p128
        %p305 = pneg %p125
        %p306 = pneg %p149
        %p307 = pneg %p146
        %p308 = pneg %p175
        %p309 = pneg %p172
        %s310 = sand.u32 %s162, 1
        %s311 = scalar_lea.sflag [#allocation5], %s310
        %s312 = sand.u32 %s162, 1
        %s313 = smul.addr %s312, 8
        %s314 = scalar_lea.vmem [#allocation9], %s313
        %s315 = smul.u32 2, %s29
        %s316 = smul.u32 2, %s30
        %s317 = smul.u32 32, %s30
        %s318 = smul.u32 2, %s29
        %p320 = scmp.eq.s32.totalorder %s30, 0
        // Predicated region
        $region53: #{tpu_custom_call.1} parent=39 // pred_check
          %p321 = pneg %p320
        $region54: #{tpu_custom_call.1} parent=39 // pred_check_branch
          %323 = sbr.rel (%p321) target = $region56
        $region55: #{tpu_custom_call.1} parent=39 // pred_region
          %324 = vst [vmem:[#allocation2] sm:$0xff] 0.0
          %325 = vst [vmem:[#allocation2 + $0x8] sm:$0xff] 0.0
          %326 = vst [vmem:[#allocation2 + $0x10] sm:$0xff] 0.0
          %327 = vst [vmem:[#allocation2 + $0x18] sm:$0xff] 0.0
        $region56: #{tpu_custom_call.1} parent=39 // pred_fallthru
          _
        %v328 = vld [vmem:[#allocation2] sm:$0xff]
        %v329 = vld [vmem:[#allocation2 + $0x8] sm:$0xff]
        %v330 = vld [vmem:[#allocation2 + $0x10] sm:$0xff]
        %v331 = vld [vmem:[#allocation2 + $0x18] sm:$0xff]
        %v332 = vld [vmem:[%s270] sm:$0xff]
        %v333 = vld [vmem:[%s270 + $0x8] sm:$0xff]
        %v334 = vld [vmem:[%s279] sm:$0xff]
        %v335 = vld [vmem:[%s279 + $0x8] sm:$0xff]
        %v336 = vld [vmem:[%s279 + $0x10] sm:$0xff]
        %v337 = vld [vmem:[%s279 + $0x18] sm:$0xff]
        %v338 = vld [vmem:[%s279 + $0x20] sm:$0xff]
        %v339 = vld [vmem:[%s279 + $0x28] sm:$0xff]
        %v340 = vld [vmem:[%s279 + $0x30] sm:$0xff]
        %v341 = vld [vmem:[%s279 + $0x38] sm:$0xff]
        %v342 = vld [vmem:[%s279 + $0x40] sm:$0xff]
        %v343 = vld [vmem:[%s279 + $0x48] sm:$0xff]
        %v344 = vld [vmem:[%s279 + $0x50] sm:$0xff]
        %v345 = vld [vmem:[%s279 + $0x58] sm:$0xff]
        %v346 = vld [vmem:[%s279 + $0x60] sm:$0xff]
        %v347 = vld [vmem:[%s279 + $0x68] sm:$0xff]
        %v348 = vld [vmem:[%s279 + $0x70] sm:$0xff]
        %v349 = vld [vmem:[%s279 + $0x78] sm:$0xff]
        %v350 = vld [vmem:[%s279 + $0x80] sm:$0xff]
        %v351 = vld [vmem:[%s279 + $0x88] sm:$0xff]
        %v352 = vld [vmem:[%s279 + $0x90] sm:$0xff]
        %v353 = vld [vmem:[%s279 + $0x98] sm:$0xff]
        %v354 = vld [vmem:[%s279 + $0xa0] sm:$0xff]
        %v355 = vld [vmem:[%s279 + $0xa8] sm:$0xff]
        %v356 = vld [vmem:[%s279 + $0xb0] sm:$0xff]
        %v357 = vld [vmem:[%s279 + $0xb8] sm:$0xff]
        %v358 = vld [vmem:[%s279 + $0xc0] sm:$0xff]
        %v359 = vld [vmem:[%s279 + $0xc8] sm:$0xff]
        %v360 = vld [vmem:[%s279 + $0xd0] sm:$0xff]
        %v361 = vld [vmem:[%s279 + $0xd8] sm:$0xff]
        %v362 = vld [vmem:[%s279 + $0xe0] sm:$0xff]
        %v363 = vld [vmem:[%s279 + $0xe8] sm:$0xff]
        %v364 = vld [vmem:[%s279 + $0xf0] sm:$0xff]
        %v365 = vld [vmem:[%s279 + $0xf8] sm:$0xff]
        %v368 = vunpack.c.l.b16 %v332
        %v369 = vunpack.c.h.b16 %v332
        %v370 = vunpack.c.l.b16 %v333
        %v371 = vunpack.c.h.b16 %v333
        %v372 = vpack.c.b16 %v370, %v368
        %v373 = vpack.c.b16 %v371, %v369
        %v408 = vunpack.c.l.b16 %v334
        %v409 = vunpack.c.h.b16 %v334
        %v410 = vunpack.c.l.b16 %v335
        %v411 = vunpack.c.h.b16 %v335
        %v412 = vunpack.c.l.b16 %v336
        %v413 = vunpack.c.h.b16 %v336
        %v414 = vunpack.c.l.b16 %v337
        %v415 = vunpack.c.h.b16 %v337
        %v416 = vunpack.c.l.b16 %v338
        %v417 = vunpack.c.h.b16 %v338
        %v418 = vunpack.c.l.b16 %v339
        %v419 = vunpack.c.h.b16 %v339
        %v420 = vunpack.c.l.b16 %v340
        %v421 = vunpack.c.h.b16 %v340
        %v422 = vunpack.c.l.b16 %v341
        %v423 = vunpack.c.h.b16 %v341
        %v424 = vunpack.c.l.b16 %v342
        %v425 = vunpack.c.h.b16 %v342
        %v426 = vunpack.c.l.b16 %v343
        %v427 = vunpack.c.h.b16 %v343
        %v428 = vunpack.c.l.b16 %v344
        %v429 = vunpack.c.h.b16 %v344
        %v430 = vunpack.c.l.b16 %v345
        %v431 = vunpack.c.h.b16 %v345
        %v432 = vunpack.c.l.b16 %v346
        %v433 = vunpack.c.h.b16 %v346
        %v434 = vunpack.c.l.b16 %v347
        %v435 = vunpack.c.h.b16 %v347
        %v436 = vunpack.c.l.b16 %v348
        %v437 = vunpack.c.h.b16 %v348
        %v438 = vunpack.c.l.b16 %v349
        %v439 = vunpack.c.h.b16 %v349
        %v440 = vunpack.c.l.b16 %v350
        %v441 = vunpack.c.h.b16 %v350
        %v442 = vunpack.c.l.b16 %v351
        %v443 = vunpack.c.h.b16 %v351
        %v444 = vunpack.c.l.b16 %v352
        %v445 = vunpack.c.h.b16 %v352
        %v446 = vunpack.c.l.b16 %v353
        %v447 = vunpack.c.h.b16 %v353
        %v448 = vunpack.c.l.b16 %v354
        %v449 = vunpack.c.h.b16 %v354
        %v450 = vunpack.c.l.b16 %v355
        %v451 = vunpack.c.h.b16 %v355
        %v452 = vunpack.c.l.b16 %v356
        %v453 = vunpack.c.h.b16 %v356
        %v454 = vunpack.c.l.b16 %v357
        %v455 = vunpack.c.h.b16 %v357
        %v456 = vunpack.c.l.b16 %v358
        %v457 = vunpack.c.h.b16 %v358
        %v458 = vunpack.c.l.b16 %v359
        %v459 = vunpack.c.h.b16 %v359
        %v460 = vunpack.c.l.b16 %v360
        %v461 = vunpack.c.h.b16 %v360
        %v462 = vunpack.c.l.b16 %v361
        %v463 = vunpack.c.h.b16 %v361
        %v464 = vunpack.c.l.b16 %v362
        %v465 = vunpack.c.h.b16 %v362
        %v466 = vunpack.c.l.b16 %v363
        %v467 = vunpack.c.h.b16 %v363
        %v468 = vunpack.c.l.b16 %v364
        %v469 = vunpack.c.h.b16 %v364
        %v470 = vunpack.c.l.b16 %v365
        %v471 = vunpack.c.h.b16 %v365
        %v472 = vpack.c.b16 %v410, %v408
        %v473 = vpack.c.b16 %v411, %v409
        %v474 = vpack.c.b16 %v414, %v412
        %v475 = vpack.c.b16 %v415, %v413
        %v476 = vpack.c.b16 %v418, %v416
        %v477 = vpack.c.b16 %v419, %v417
        %v478 = vpack.c.b16 %v422, %v420
        %v479 = vpack.c.b16 %v423, %v421
        %v480 = vpack.c.b16 %v426, %v424
        %v481 = vpack.c.b16 %v427, %v425
        %v482 = vpack.c.b16 %v430, %v428
        %v483 = vpack.c.b16 %v431, %v429
        %v484 = vpack.c.b16 %v434, %v432
        %v485 = vpack.c.b16 %v435, %v433
        %v486 = vpack.c.b16 %v438, %v436
        %v487 = vpack.c.b16 %v439, %v437
        %v488 = vpack.c.b16 %v442, %v440
        %v489 = vpack.c.b16 %v443, %v441
        %v490 = vpack.c.b16 %v446, %v444
        %v491 = vpack.c.b16 %v447, %v445
        %v492 = vpack.c.b16 %v450, %v448
        %v493 = vpack.c.b16 %v451, %v449
        %v494 = vpack.c.b16 %v454, %v452
        %v495 = vpack.c.b16 %v455, %v453
        %v496 = vpack.c.b16 %v458, %v456
        %v497 = vpack.c.b16 %v459, %v457
        %v498 = vpack.c.b16 %v462, %v460
        %v499 = vpack.c.b16 %v463, %v461
        %v500 = vpack.c.b16 %v466, %v464
        %v501 = vpack.c.b16 %v467, %v465
        %v502 = vpack.c.b16 %v470, %v468
        %v503 = vpack.c.b16 %v471, %v469
        %536 = vmatprep.subr.bf16.mxu0 %v473
        %537 = vmatpush1.bf16.msra.mxu0 %v472
        %538 = vmatprep.subr.bf16.mxu0 %v475
        %539 = vmatpush1.bf16.msra.mxu0 %v474
        %540 = vmatprep.subr.bf16.mxu0 %v477
        %541 = vmatpush1.bf16.msra.mxu0 %v476
        %542 = vmatprep.subr.bf16.mxu0 %v479
        %543 = vmatpush1.bf16.msra.mxu0 %v478
        %544 = vmatprep.subr.bf16.mxu0 %v481
        %545 = vmatpush1.bf16.msra.mxu0 %v480
        %546 = vmatprep.subr.bf16.mxu0 %v483
        %547 = vmatpush1.bf16.msra.mxu0 %v482
        %548 = vmatprep.subr.bf16.mxu0 %v485
        %549 = vmatpush1.bf16.msra.mxu0 %v484
        %550 = vmatprep.subr.bf16.mxu0 %v487
        %551 = vmatpush1.bf16.msra.mxu0 %v486
        %552 = vmatprep.subr.bf16.mxu0 %v489
        %553 = vmatpush1.bf16.msra.mxu0 %v488
        %554 = vmatprep.subr.bf16.mxu0 %v491
        %555 = vmatpush1.bf16.msra.mxu0 %v490
        %556 = vmatprep.subr.bf16.mxu0 %v493
        %557 = vmatpush1.bf16.msra.mxu0 %v492
        %558 = vmatprep.subr.bf16.mxu0 %v495
        %559 = vmatpush1.bf16.msra.mxu0 %v494
        %560 = vmatprep.subr.bf16.mxu0 %v497
        %561 = vmatpush1.bf16.msra.mxu0 %v496
        %562 = vmatprep.subr.bf16.mxu0 %v499
        %563 = vmatpush1.bf16.msra.mxu0 %v498
        %564 = vmatprep.subr.bf16.mxu0 %v501
        %565 = vmatpush1.bf16.msra.mxu0 %v500
        %566 = vmatprep.subr.bf16.mxu0 %v503
        %567 = vmatpush1.bf16.msra.mxu0 %v502
        %568 = vmatprep.mubr.bf16.mxu0 %v373
        %569 = vmatmul.mubr.bf16.gmra.mrb[0].mxu0 %v372
        %v570 = vpop.f32.mrb[0].mxu0
        %v571 = vadd.f32 0.0, %v570
        %v572 = vpop.f32.mrb[0].mxu0
        %v573 = vadd.f32 0.0, %v572
        %v574 = vpop.f32.mrb[0].mxu0
        %v575 = vadd.f32 0.0, %v574
        %v576 = vpop.f32.mrb[0].mxu0
        %v577 = vadd.f32 0.0, %v576
        %578 = vdwg.mxu0
        %v579 = vadd.f32 %v328, %v571
        %v580 = vadd.f32 %v329, %v573
        %v581 = vadd.f32 %v330, %v575
        %v582 = vadd.f32 %v331, %v577
        %583 = vst [vmem:[#allocation2] sm:$0xff] %v579
        %584 = vst [vmem:[#allocation2 + $0x8] sm:$0xff] %v580
        %585 = vst [vmem:[#allocation2 + $0x10] sm:$0xff] %v581
        %586 = vst [vmem:[#allocation2 + $0x18] sm:$0xff] %v582
        %p587 = scmp.eq.s32.totalorder %s30, 1
        // Predicated region
        $region57: #{tpu_custom_call.1} parent=39 // pred_check
          %p588 = pneg %p587
        $region58: #{tpu_custom_call.1} parent=39 // pred_check_branch
          %590 = sbr.rel (%p588) target = $region60
        $region59: #{tpu_custom_call.1} parent=39 // pred_region
          %v591 = vld [vmem:[#allocation2] sm:$0xff]
          %v592 = vld [vmem:[#allocation2 + $0x8] sm:$0xff]
          %v593 = vld [vmem:[#allocation2 + $0x10] sm:$0xff]
          %v594 = vld [vmem:[#allocation2 + $0x18] sm:$0xff]
          %v595 = vld [vmem:[%s2] sm:$0x3]
          %v597 = vlaneseq
          %v598 = vshrl.u32 %v597, 7
          %v599 = vsub.s32 0, %v598
          %v600 = vrot.slane %v595, %v599
          %v601 = vlaneseq
          %v602 = vshrl.u32 %v601, 7
          %v603 = vsub.s32 1, %v602
          %v604 = vrot.slane %v595, %v603
          %v607 = vadd.f32 %v591, %v600
          %v608 = vadd.f32 %v592, %v604
          %v609 = vadd.f32 %v593, %v600
          %v610 = vadd.f32 %v594, %v604
          %v611 = vmax.f32 %v607, 0.0
          %v612 = vmax.f32 %v608, 0.0
          %v613 = vmax.f32 %v609, 0.0
          %v614 = vmax.f32 %v610, 0.0
          %v615 = vpack.c.bf16 %v613, %v611
          %v616 = vpack.c.bf16 %v614, %v612
          %v617 = vld [vmem:[#allocation8] sm:$0xf]
          %v618 = vld [vmem:[#allocation8 + $0x4] sm:$0xf]
          %v619 = vld [vmem:[#allocation8 + $0x8] sm:$0xf]
          %v620 = vld [vmem:[#allocation8 + $0xc] sm:$0xf]
          %v621 = vld [vmem:[#allocation8 + $0x10] sm:$0xf]
          %v622 = vld [vmem:[#allocation8 + $0x14] sm:$0xf]
          %v623 = vld [vmem:[#allocation8 + $0x18] sm:$0xf]
          %v624 = vld [vmem:[#allocation8 + $0x1c] sm:$0xf]
          %v625 = vld [vmem:[#allocation8 + $0x20] sm:$0xf]
          %v626 = vld [vmem:[#allocation8 + $0x24] sm:$0xf]
          %v627 = vld [vmem:[#allocation8 + $0x28] sm:$0xf]
          %v628 = vld [vmem:[#allocation8 + $0x2c] sm:$0xf]
          %v629 = vld [vmem:[#allocation8 + $0x30] sm:$0xf]
          %v630 = vld [vmem:[#allocation8 + $0x34] sm:$0xf]
          %v631 = vld [vmem:[#allocation8 + $0x38] sm:$0xf]
          %v632 = vld [vmem:[#allocation8 + $0x3c] sm:$0xf]
          %v633 = vld [vmem:[#allocation8 + $0x40] sm:$0xf]
          %v634 = vld [vmem:[#allocation8 + $0x44] sm:$0xf]
          %v635 = vld [vmem:[#allocation8 + $0x48] sm:$0xf]
          %v636 = vld [vmem:[#allocation8 + $0x4c] sm:$0xf]
          %v637 = vld [vmem:[#allocation8 + $0x50] sm:$0xf]
          %v638 = vld [vmem:[#allocation8 + $0x54] sm:$0xf]
          %v639 = vld [vmem:[#allocation8 + $0x58] sm:$0xf]
          %v640 = vld [vmem:[#allocation8 + $0x5c] sm:$0xf]
          %v641 = vld [vmem:[#allocation8 + $0x60] sm:$0xf]
          %v642 = vld [vmem:[#allocation8 + $0x64] sm:$0xf]
          %v643 = vld [vmem:[#allocation8 + $0x68] sm:$0xf]
          %v644 = vld [vmem:[#allocation8 + $0x6c] sm:$0xf]
          %v645 = vld [vmem:[#allocation8 + $0x70] sm:$0xf]
          %v646 = vld [vmem:[#allocation8 + $0x74] sm:$0xf]
          %v647 = vld [vmem:[#allocation8 + $0x78] sm:$0xf]
          %v648 = vld [vmem:[#allocation8 + $0x7c] sm:$0xf]
          %v649 = vld [vmem:[%s4] sm:$0x1]
          %v651 = vlaneseq
          %v652 = vshrl.u32 %v651, 7
          %v653 = vsub.s32 0, %v652
          %v654 = vrot.slane %v649, %v653
          %v688 = vunpack.c.l.b16 %v617
          %v689 = vunpack.c.l.b16 %v618
          %v690 = vunpack.c.l.b16 %v619
          %v691 = vunpack.c.l.b16 %v620
          %v692 = vunpack.c.l.b16 %v621
          %v693 = vunpack.c.l.b16 %v622
          %v694 = vunpack.c.l.b16 %v623
          %v695 = vunpack.c.l.b16 %v624
          %v696 = vunpack.c.l.b16 %v625
          %v697 = vunpack.c.l.b16 %v626
          %v698 = vunpack.c.l.b16 %v627
          %v699 = vunpack.c.l.b16 %v628
          %v700 = vunpack.c.l.b16 %v629
          %v701 = vunpack.c.l.b16 %v630
          %v702 = vunpack.c.l.b16 %v631
          %v703 = vunpack.c.l.b16 %v632
          %v704 = vunpack.c.l.b16 %v633
          %v705 = vunpack.c.l.b16 %v634
          %v706 = vunpack.c.l.b16 %v635
          %v707 = vunpack.c.l.b16 %v636
          %v708 = vunpack.c.l.b16 %v637
          %v709 = vunpack.c.l.b16 %v638
          %v710 = vunpack.c.l.b16 %v639
          %v711 = vunpack.c.l.b16 %v640
          %v712 = vunpack.c.l.b16 %v641
          %v713 = vunpack.c.l.b16 %v642
          %v714 = vunpack.c.l.b16 %v643
          %v715 = vunpack.c.l.b16 %v644
          %v716 = vunpack.c.l.b16 %v645
          %v717 = vunpack.c.l.b16 %v646
          %v718 = vunpack.c.l.b16 %v647
          %v719 = vunpack.c.l.b16 %v648
          %v720 = vpack.c.b16 %v689, %v688
          %v721 = vpack.c.b16 %v691, %v690
          %v722 = vpack.c.b16 %v693, %v692
          %v723 = vpack.c.b16 %v695, %v694
          %v724 = vpack.c.b16 %v697, %v696
          %v725 = vpack.c.b16 %v699, %v698
          %v726 = vpack.c.b16 %v701, %v700
          %v727 = vpack.c.b16 %v703, %v702
          %v728 = vpack.c.b16 %v705, %v704
          %v729 = vpack.c.b16 %v707, %v706
          %v730 = vpack.c.b16 %v709, %v708
          %v731 = vpack.c.b16 %v711, %v710
          %v732 = vpack.c.b16 %v713, %v712
          %v733 = vpack.c.b16 %v715, %v714
          %v734 = vpack.c.b16 %v717, %v716
          %v735 = vpack.c.b16 %v719, %v718
          %752 = vmatprep.subr.bf16.mxu0 0
          %753 = vmatpush1.bf16.msra.mxu0 %v720
          %754 = vmatprep.subr.bf16.mxu0 0
          %755 = vmatpush1.bf16.msra.mxu0 %v721
          %756 = vmatprep.subr.bf16.mxu0 0
          %757 = vmatpush1.bf16.msra.mxu0 %v722
          %758 = vmatprep.subr.bf16.mxu0 0
          %759 = vmatpush1.bf16.msra.mxu0 %v723
          %760 = vmatprep.subr.bf16.mxu0 0
          %761 = vmatpush1.bf16.msra.mxu0 %v724
          %762 = vmatprep.subr.bf16.mxu0 0
          %763 = vmatpush1.bf16.msra.mxu0 %v725
          %764 = vmatprep.subr.bf16.mxu0 0
          %765 = vmatpush1.bf16.msra.mxu0 %v726
          %766 = vmatprep.subr.bf16.mxu0 0
          %767 = vmatpush1.bf16.msra.mxu0 %v727
          %768 = vmatprep.subr.bf16.mxu0 0
          %769 = vmatpush1.bf16.msra.mxu0 %v728
          %770 = vmatprep.subr.bf16.mxu0 0
          %771 = vmatpush1.bf16.msra.mxu0 %v729
          %772 = vmatprep.subr.bf16.mxu0 0
          %773 = vmatpush1.bf16.msra.mxu0 %v730
          %774 = vmatprep.subr.bf16.mxu0 0
          %775 = vmatpush1.bf16.msra.mxu0 %v731
          %776 = vmatprep.subr.bf16.mxu0 0
          %777 = vmatpush1.bf16.msra.mxu0 %v732
          %778 = vmatprep.subr.bf16.mxu0 0
          %779 = vmatpush1.bf16.msra.mxu0 %v733
          %780 = vmatprep.subr.bf16.mxu0 0
          %781 = vmatpush1.bf16.msra.mxu0 %v734
          %782 = vmatprep.subr.bf16.mxu0 0
          %783 = vmatpush1.bf16.msra.mxu0 %v735
          %784 = vmatprep.mubr.bf16.mxu0 %v616
          %785 = vmatmul.mubr.bf16.gmra.mrb[0].mxu0 %v615
          %v786 = vpop.f32.mrb[0].mxu0
          %v787 = vadd.f32 %v654, %v786
          %v788 = vpop.f32.mrb[0].mxu0
          %v789 = vpop.f32.mrb[0].mxu0
          %v790 = vadd.f32 %v654, %v789
          %v791 = vpop.f32.mrb[0].mxu0
          %792 = vdwg.mxu0
          %v793 = vpack.c.bf16 %v790, %v787
          %v795 = vunpack.c.l.b16 %v793
          %v796 = vunpack.c.h.b16 %v793
          %v797 = vpack.c.b16 %v795, %v795
          %v798 = vpack.c.b16 %v796, %v796
          %801 = vst [vmem:[%s314] sm:$0xf] %v797
          %802 = vst [vmem:[%s314 + $0x4] sm:$0xf] %v798
        $region60: #{tpu_custom_call.1} parent=39 // pred_fallthru
          _
        %s803 = sand.u32 %s162, 1
        %s804 = scalar_lea.sflag [#allocation5], %s803
        %s805 = sand.u32 %s162, 1
        %s806 = smul.addr %s805, 8
        %s807 = scalar_lea.vmem [#allocation9], %s806
        // Predicated region
        $region61: #{tpu_custom_call.1} parent=39 // pred_check
          %p808 = pneg %p172
        $region62: #{tpu_custom_call.1} parent=39 // pred_check_branch
          %810 = sbr.rel (%p808) target = $region64
        $region63: #{tpu_custom_call.1} parent=39 // pred_region
          %s811 = smul.u32 2, %s29
          %s813 = ssub.s32 128, 128
          %814 = vsyncadd %s804, %s813
          %s815 = smul.addr %s811, 64
          %s816 = scalar_lea.hbm %s5, %s815
          %s817 = sshll.u32 %s807, 4
          %s818 = int_to_ptr.vmem [resolvable:$true] %s817
          %823 = dma.vmem_to_hbm [thread:$0]  %s818, 128, %s816, %s804, 64, 64, 4
        $region64: #{tpu_custom_call.1} parent=39 // pred_fallthru
          _
      $region40: #{tpu_custom_call.1} parent=5 // pred_fallthru
        _
      %p824 = scmp.le.s32.totalorder 2, %s20
      // Predicated region
      $region65: #{tpu_custom_call.1} parent=5 // pred_check
        %p825 = pneg %p824
      $region66: #{tpu_custom_call.1} parent=5 // pred_check_branch
        %827 = sbr.rel (%p825) target = $region68
      $region67: #{tpu_custom_call.1} parent=5 // pred_region
        %s828 = ssub.s32 %s20, 2
        // Predicated region
        $region69: #{tpu_custom_call.1} parent=67 // pred_check
          %p829 = pneg %p178
        $region70: #{tpu_custom_call.1} parent=67 // pred_check_branch
          %831 = sbr.rel (%p829) target = $region72
        $region71: #{tpu_custom_call.1} parent=67 // pred_region
          %s832 = sand.u32 %s163, 1
          %s833 = scalar_lea.sflag [#allocation5], %s832
          %s834 = sand.u32 %s163, 1
          %s835 = smul.addr %s834, 8
          %s836 = scalar_lea.vmem [#allocation9], %s835
          %837 = dma.done %s833, 128
        $region72: #{tpu_custom_call.1} parent=67 // pred_fallthru
          _
      $region68: #{tpu_custom_call.1} parent=5 // pred_fallthru
        _
    $region6: #{tpu_custom_call.1} parent=1 // loop_footer
      %s24 = sadd.s32 1, %s20
    $region7: #{tpu_custom_call.1} parent=1 // loop_footer_branch
      %19 = sbr.rel target = $region3
    $region8: #{tpu_custom_call.1} parent=1 // loop_exit
      _
    %838 = vsyncpa [#allocation4], 1
    %s839 = scalar_lea.sflag [#allocation4], 1
    %840 = vsyncpa %s839, 1
    %841 = vsyncpa [#allocation7], 1
    %s842 = scalar_lea.sflag [#allocation7], 1
    %843 = vsyncpa %s842, 1
    %844 = vsyncpa [#allocation5], 1
    %s845 = scalar_lea.sflag [#allocation5], 1
    %846 = vsyncpa %s845, 1

</llo_original>
